<compile_context>
chip_gen: v5e
topology: v5e:2x2
jax: 0.10.0
libtpu: 0.0.40
codegen_flags: <defaults>
</compile_context>

<pallas_src>
import functools

import numpy as np
import jax
import jax.numpy as jnp
from jax import lax
from jax.experimental import pallas as pl
from jax.experimental.pallas import tpu as pltpu


# ---------------------------------------------------------------------------
# In-kernel building blocks
# ---------------------------------------------------------------------------

def _conv_apply(src_ref, w_ref, bias_ref, pad_ref, res_ref, dst_ref, *,
                K, stride, L_in, L_out):
    """One Conv1d(+folded BN) + ReLU (+ residual add), fully inside VMEM.

    src_ref:  (L_in, Cin)      input activation (VMEM scratch or the x input block)
    w_ref:    (K*Cin, Cout)    flattened conv weights (BN scale already folded in)
    bias_ref: (1, Cout)|None   folded BN bias
    pad_ref:  (1, Cin)|None    border value (-shift/scale for folded BN, else zeros)
    res_ref:  (L_out, Cout)|None  residual, added AFTER the ReLU
    dst_ref:  (L_out, Cout)

    out[l] = sum_k x_pad[l*stride + k] @ w[k]; the K taps are built from at most
    `stride` parity reads of src_ref plus concatenated pad rows, then fused into a
    single deep MXU dot.
    """
    assert stride >= 1 and (stride > 1 or L_in == L_out)
    pad = K // 2
    cin = src_ref.shape[-1]
    pad_row = pad_ref[...] if pad_ref is not None else jnp.zeros((1, cin), jnp.float32)

    par_vals = {}   # one read per parity class of input rows
    taps = []
    for k in range(K):
        off = k - pad                      # x index offset: x[stride*l + off]
        p = off % stride                   # parity within the stride group
        q = (off - p) // stride            # row shift within the parity slice
        if p not in par_vals:
            if stride == 1:
                par_vals[p] = src_ref[...]
            else:
                # par[m] = x[stride*m + p]; max row = p + stride*(L_out-1) < L_in.
                par_vals[p] = src_ref[pl.ds(p, L_out, stride=stride), :]
        par = par_vals[p]
        if q == 0:
            tap = par
        elif q < 0:    # left border: first -q output rows read the pad value
            head = jnp.broadcast_to(pad_row, (-q, cin)).astype(jnp.float32)
            tap = jnp.concatenate([head, par[:L_out + q, :]], axis=0)
        else:          # right border: last q output rows read the pad value
            tail = jnp.broadcast_to(pad_row, (q, cin)).astype(jnp.float32)
            tap = jnp.concatenate([par[q:, :], tail], axis=0)
        taps.append(tap)

    # One deep contraction (L_out, K*Cin) x (K*Cin, Cout) instead of K shallow dots.
    lhs = taps[0] if K == 1 else jnp.concatenate(taps, axis=-1)
    acc = jnp.dot(lhs, w_ref[...], preferred_element_type=jnp.float32)
    if bias_ref is not None:
        acc = acc + bias_ref[...]
    acc = jnp.maximum(acc, 0.0)            # ReLU
    if res_ref is not None:
        acc = acc + res_ref[...]           # x + skip_layers(x): add after the ReLU
    dst_ref[...] = acc.astype(dst_ref.dtype)


def _mlp_kernel(x_ref, *refs, n_layers):
    """Entire MLP head fused: (Linear+ReLU)*(n_layers-1) + Linear, all in VMEM."""
    *wb_refs, o_ref = refs
    h = x_ref[...]
    for i in range(n_layers):
        w = wb_refs[2 * i][...]
        b = wb_refs[2 * i + 1][...]
        h = jnp.dot(h, w, preferred_element_type=jnp.float32) + b
        if i < n_layers - 1:
            h = jnp.maximum(h, 0.0)        # Dropout = identity in eval
    o_ref[...] = h.astype(o_ref.dtype)


# ---------------------------------------------------------------------------
# Wrappers around pallas_call
# ---------------------------------------------------------------------------

def conv_stack_forward(x, layers):
    """Run ALL Conv1Block layers in one pallas_call; activations stay in VMEM.

    x: (B, L0, C0) channels-last input.
    layers: list of dicts with
        'w'            : (K, Cin, Cout) conv weight (== PyTorch weight.transpose(2,1,0))
        'stride'       : conv stride
        'bn'           : None or (scale, shift) of the eval-mode BatchNorm1d BEFORE the conv
        'is_main'      : True for the block's strided main conv (its output is the residual)
        'add_residual' : True for the last skip conv of a block (adds the main conv output)
    Returns the final activation (B, Lf, Cf).
    """
    B, L0, C0 = x.shape
    n_layers = len(layers)

    # ---- static per-layer geometry --------------------------------------
    metas = []
    L_in, C_in = L0, C0
    for lyr in layers:
        K, _, C_out = lyr['w'].shape
        assert K % 2 == 1, "odd kernel_size expected (padding = K // 2)"
        s = lyr['stride']
        pad = K // 2
        L_out = (L_in + 2 * pad - K) // s + 1
        metas.append(dict(K=K, stride=s, L_in=L_in, L_out=L_out,
                          C_in=C_in, C_out=C_out))
        L_in, C_in = L_out, C_out
    Lf, Cf = L_in, C_in

    # ---- operands: weights (BN-scaled, flattened), folded biases, pad rows ----
    operands = [x]
    in_specs = [pl.BlockSpec((None, L0, C0), lambda b: (b, 0, 0))]

    def add_operand(arr):
        operands.append(arr)
        nd = arr.ndim
        in_specs.append(pl.BlockSpec(arr.shape, lambda b: (0,) * nd))
        return len(operands) - 1

    layer_ops, srcs, ress = [], [], []
    y0_slot = None
    for li, (lyr, m) in enumerate(zip(layers, metas)):
        w = lyr['w'].astype(jnp.float32)
        if lyr.get('bn') is not None:
            # Fold eval-mode BN (z = scale*h + shift, applied BEFORE the conv):
            #   w' = w * scale[ci];   bias[co] = sum_{k,ci} w[k,ci,co] * shift[ci];
            #   pad rows hold -shift/scale so the fold matches zero padding exactly.
            scale, shift = lyr['bn']
            w_eff = w * scale[None, :, None]
            bias = jnp.einsum('kio,i->o', w, shift,
                              precision=lax.Precision.HIGHEST)[None, :].astype(jnp.float32)
            pad_row = (-shift / scale)[None, :].astype(jnp.float32)
        else:
            w_eff, bias, pad_row = w, None, None
        w_flat = w_eff.reshape(m['K'] * m['C_in'], m['C_out'])
        wi = add_operand(w_flat)
        bi = add_operand(bias) if bias is not None else None
        pi = add_operand(pad_row) if pad_row is not None else None
        layer_ops.append((wi, bi, pi))

        srcs.append(li - 1)                       # -1 == the x input block
        if lyr['is_main']:
            y0_slot = li
        ress.append(y0_slot if lyr.get('add_residual') else None)

    n_ops = len(operands) - 1
    # One VMEM scratch per intermediate activation; the last layer writes the output.
    scratch_shapes = [pltpu.VMEM((m['L_out'], m['C_out']), jnp.float32)
                      for m in metas[:-1]]

    def kernel(*refs):
        x_ref = refs[0]
        op_refs = refs[1:1 + n_ops]
        out_ref = refs[1 + n_ops]
        scr = refs[2 + n_ops:]

        def act_ref(slot):
            if slot == -1:
                return x_ref
            if slot == n_layers - 1:
                return out_ref
            return scr[slot]

        for li, m in enumerate(metas):
            wi, bi, pi = layer_ops[li]
            _conv_apply(
                act_ref(srcs[li]),
                op_refs[wi - 1],
                None if bi is None else op_refs[bi - 1],
                None if pi is None else op_refs[pi - 1],
                None if ress[li] is None else act_ref(ress[li]),
                act_ref(li),
                K=m['K'], stride=m['stride'], L_in=m['L_in'], L_out=m['L_out'])

    return pl.pallas_call(
        kernel,
        grid=(B,),
        in_specs=in_specs,
        out_specs=pl.BlockSpec((None, Lf, Cf), lambda b: (b, 0, 0)),
        out_shape=jax.ShapeDtypeStruct((B, Lf, Cf), x.dtype),
        scratch_shapes=scratch_shapes,
        compiler_params=pltpu.CompilerParams(
            dimension_semantics=("parallel",)),      # batch shards across v7x TCs
    )(*operands)


def mlp_head(x_flat, layers):
    """Fused MLP head: layers = [(w, b), ...]; ReLU after every layer except the last."""
    n = len(layers)
    B = x_flat.shape[0]
    fout = layers[-1][0].shape[1]
    operands = [x_flat]
    for (w, b) in layers:
        operands += [w, b]
    kern = functools.partial(_mlp_kernel, n_layers=n)
    return pl.pallas_call(
        kern,
        out_shape=jax.ShapeDtypeStruct((B, fout), x_flat.dtype),
    )(*operands)


# ---------------------------------------------------------------------------
# Model (Conv1Block / Model_V2 forward)
# ---------------------------------------------------------------------------

def model_forward(x, params):
    # x: (B, data_width, in_channels) == the PyTorch input BEFORE its transpose(2, 1);
    # we keep channels-last the whole way (lane dim = channels).
    layers = []
    for blk, stride in ([(b, 2) for b in params['encoder']] +
                        [(b, 1) for b in params['reducer']]):
        layers.append(dict(w=blk['conv_w'], stride=stride, bn=None,
                           is_main=True, add_residual=False))
        nskip = len(blk['skip'])
        for j, sp in enumerate(blk['skip']):
            layers.append(dict(w=sp['conv_w'], stride=1,
                               bn=(sp['bn_scale'], sp['bn_shift']),
                               is_main=False,
                               add_residual=(j == nskip - 1)))

    h = conv_stack_forward(x, layers)                 # (B, Lf, Cf), single pallas_call
    B, Lf, Cf = h.shape
    x_flat = h.reshape(B, Lf * Cf)                    # free reshape, (l, c) flatten order
    # PyTorch flattens in (C, L) order: permute the first Linear's rows once (params are
    # closed over under jit, so this is constant-folded at trace time).
    w1, b1 = params['lin'][0]
    w1p = w1.reshape(Cf, Lf, -1).transpose(1, 0, 2).reshape(Lf * Cf, -1)
    mlp_layers = [(w1p, b1)] + list(params['lin'][1:])
    return mlp_head(x_flat, mlp_layers)


# ---------------------------------------------------------------------------
# Pure-JAX reference of the PyTorch forward (eval mode), for correctness checks
# ---------------------------------------------------------------------------

def reference_forward(x, params):
    def conv(h, w, stride):
        pad = w.shape[0] // 2
        return lax.conv_general_dilated(
            h, w, window_strides=(stride,), padding=[(pad, pad)],
            dimension_numbers=('NWC', 'WIO', 'NWC'),
            precision=lax.Precision.HIGHEST)

    h = x
    for blk, stride in ([(b, 2) for b in params['encoder']] +
                        [(b, 1) for b in params['reducer']]):
        y0 = jax.nn.relu(conv(h, blk['conv_w'], stride))
        t = y0
        for sp in blk['skip']:
            z = t * sp['bn_scale'] + sp['bn_shift']       # eval-mode BatchNorm1d
            t = jax.nn.relu(conv(z, sp['conv_w'], 1))
        h = y0 + t if blk['skip'] else y0

    B = h.shape[0]
    xf = jnp.transpose(h, (0, 2, 1)).reshape(B, -1)       # PyTorch (C, L) flatten order
    n = len(params['lin'])
    for i, (w, b) in enumerate(params['lin']):
        xf = jnp.dot(xf, w, precision=lax.Precision.HIGHEST) + b
        if i < n - 1:
            xf = jax.nn.relu(xf)                          # Dropout = identity in eval
    return xf


# ---------------------------------------------------------------------------
# Deterministic parameter init (PyTorch-equivalent shapes, kernel-friendly layout)
# ---------------------------------------------------------------------------

def _init_conv_w(key, k, cin, cout):
    # PyTorch Conv1d weight is (cout, cin, k); stored here as (k, cin, cout).
    s = 1.0 / np.sqrt(cin * k)
    return jax.random.uniform(key, (k, cin, cout), jnp.float32, -s, s)


def _init_linear(key, fin, fout):
    kw, kb = jax.random.split(key)
    s = 1.0 / np.sqrt(fin)
    w = jax.random.uniform(kw, (fin, fout), jnp.float32, -s, s)   # (fin, fout) == W.T
    b = jax.random.uniform(kb, (1, fout), jnp.float32, -s, s)
    return w, b


def _init_conv1block(key, cin, cout, k, steps, random_bn=False):
    keys = jax.random.split(key, 1 + 2 * max(1, steps))
    eps = 1e-5
    blk = {'conv_w': _init_conv_w(keys[0], k, cin, cout), 'skip': []}
    for i in range(steps):
        kw, kb = keys[1 + 2 * i], keys[2 + 2 * i]
        if random_bn:
            # Non-trivial running stats / affine (as in a trained model, eval mode).
            ks, kh = jax.random.split(kb)
            scale = jax.random.uniform(ks, (cout,), jnp.float32, 0.5, 1.5)
            shift = jax.random.uniform(kh, (cout,), jnp.float32, -0.5, 0.5)
        else:
            # Fresh BatchNorm1d in eval mode: gamma=1, beta=0, mean=0, var=1.
            scale = jnp.full((cout,), 1.0 / np.sqrt(1.0 + eps), jnp.float32)
            shift = jnp.zeros((cout,), jnp.float32)
        blk['skip'].append({'bn_scale': scale, 'bn_shift': shift,
                            'conv_w': _init_conv_w(kw, k, cout, cout)})
    return blk


def init_params(key, cfg):
    k = cfg['kernel_size']
    enc_ch = np.linspace(cfg['in_channels'], cfg['encoder_out_channels'],
                         cfg['encode_layers'] + 1, dtype=int)
    red_ch = np.linspace(cfg['encoder_out_channels'], cfg['reduce_out_channels'],
                         cfg['reduce_layers'] + 1, dtype=int)
    flat_features = cfg['reduce_out_channels'] * cfg['data_width'] // 2 ** cfg['encode_layers']

    n_keys = (len(enc_ch) - 1) + (len(red_ch) - 1) + (2 + cfg['lin_steps'])
    keys = iter(jax.random.split(key, n_keys))
    rb = cfg.get('random_bn', False)

    encoder = [_init_conv1block(next(keys), int(ci), int(co), k, cfg['steps'], rb)
               for ci, co in zip(enc_ch[:-1], enc_ch[1:])]
    reducer = [_init_conv1block(next(keys), int(ci), int(co), k, cfg['steps'], rb)
               for ci, co in zip(red_ch[:-1], red_ch[1:])]

    lin = [_init_linear(next(keys), flat_features, cfg['lin_dims'])]
    for _ in range(cfg['lin_steps']):
        lin.append(_init_linear(next(keys), cfg['lin_dims'], cfg['lin_dims']))
    lin.append(_init_linear(next(keys), cfg['lin_dims'], cfg['out_features']))

    return {'encoder': encoder, 'reducer': reducer, 'lin': lin}


# ---------------------------------------------------------------------------

if __name__ == "__main__":
    def run_case(cfg, key):
        k_params, k_x = jax.random.split(key)
        params = init_params(k_params, cfg)
        x = jax.random.normal(
            k_x, (cfg['batch'], cfg['data_width'], cfg['in_channels']), jnp.float32)

        fwd = jax.jit(lambda xx: model_forward(xx, params))
        out = jax.block_until_ready(fwd(x))
        assert out.shape == (cfg['batch'], cfg['out_features']), out.shape
        assert bool(jnp.all(jnp.isfinite(out)))

        ref = reference_forward(x, params)
        err = float(jnp.max(jnp.abs(out - ref)))
        assert bool(jnp.allclose(out, ref, rtol=2e-3, atol=2e-3)), \
            f"mismatch vs reference: max |diff| = {err}"
        return out

    base_key, alt_key = jax.random.split(jax.random.PRNGKey(0))

    # Small stand-in for the default Model_V2 (data_width=4096, 256 channels).
    cfg1 = dict(kernel_size=3, encode_layers=3, encoder_out_channels=32,
                reduce_layers=3, reduce_out_channels=4, steps=1, lin_steps=1,
                lin_dims=32, in_channels=8, out_features=1, data_width=64,
                batch=2, random_bn=False)
    run_case(cfg1, base_key)

    # Second case: steps=2 (skip step without residual), non-multiple-of-8 channels,
    # non-trivial BN running stats (exercises the full fold + pad value), batch=3.
    cfg2 = dict(kernel_size=3, encode_layers=2, encoder_out_channels=24,
                reduce_layers=2, reduce_out_channels=6, steps=2, lin_steps=2,
                lin_dims=48, in_channels=5, out_features=3, data_width=128,
                batch=3, random_bn=True)
    run_case(cfg2, alt_key)

    print("KERNEL_OK")
</pallas_src>

<mosaic_0001>
module attributes {stable_mosaic.version = 11 : i64} {
  func.func @_mlp_kernel(%arg0: memref<2x32xf32, #tpu.memory_space<vmem>>, %arg1: memref<32x32xf32, #tpu.memory_space<vmem>>, %arg2: memref<1x32xf32, #tpu.memory_space<vmem>>, %arg3: memref<32x32xf32, #tpu.memory_space<vmem>>, %arg4: memref<1x32xf32, #tpu.memory_space<vmem>>, %arg5: memref<32x1xf32, #tpu.memory_space<vmem>>, %arg6: memref<1x1xf32, #tpu.memory_space<vmem>>, %arg7: memref<2x1xf32, #tpu.memory_space<vmem>>) attributes {dimension_semantics = [], scalar_prefetch = 0 : i64, scratch_operands = 0 : i64, tpu.core_type = #tpu.core_type<tc>} {
    %c0 = arith.constant 0 : index
    %c0_0 = arith.constant 0 : index
    %0 = vector.load %arg0[%c0, %c0_0] : memref<2x32xf32, #tpu.memory_space<vmem>>, vector<2x32xf32>
    %c0_1 = arith.constant 0 : index
    %c0_2 = arith.constant 0 : index
    %1 = vector.load %arg1[%c0_1, %c0_2] : memref<32x32xf32, #tpu.memory_space<vmem>>, vector<32x32xf32>
    %c0_3 = arith.constant 0 : index
    %c0_4 = arith.constant 0 : index
    %2 = vector.load %arg2[%c0_3, %c0_4] : memref<1x32xf32, #tpu.memory_space<vmem>>, vector<1x32xf32>
    %cst = arith.constant dense<0.000000e+00> : vector<2x32xf32>
    %3 = tpu.matmul %0, %1, %cst {dimension_numbers = #tpu.dot_dimension_numbers<[1], [0], [0], [1], [0, 0, 1, 1], [], []>} : vector<2x32xf32>, vector<32x32xf32>, vector<2x32xf32> -> vector<2x32xf32>
    %4 = vector.broadcast %2 : vector<1x32xf32> to vector<2x32xf32>
    %5 = arith.addf %3, %4 : vector<2x32xf32>
    %cst_5 = arith.constant 0.000000e+00 : f32
    %6 = vector.broadcast %cst_5 : f32 to vector<2x32xf32>
    %7 = arith.maximumf %5, %6 : vector<2x32xf32>
    %c0_6 = arith.constant 0 : index
    %c0_7 = arith.constant 0 : index
    %8 = vector.load %arg3[%c0_6, %c0_7] : memref<32x32xf32, #tpu.memory_space<vmem>>, vector<32x32xf32>
    %c0_8 = arith.constant 0 : index
    %c0_9 = arith.constant 0 : index
    %9 = vector.load %arg4[%c0_8, %c0_9] : memref<1x32xf32, #tpu.memory_space<vmem>>, vector<1x32xf32>
    %cst_10 = arith.constant dense<0.000000e+00> : vector<2x32xf32>
    %10 = tpu.matmul %7, %8, %cst_10 {dimension_numbers = #tpu.dot_dimension_numbers<[1], [0], [0], [1], [0, 0, 1, 1], [], []>} : vector<2x32xf32>, vector<32x32xf32>, vector<2x32xf32> -> vector<2x32xf32>
    %11 = vector.broadcast %9 : vector<1x32xf32> to vector<2x32xf32>
    %12 = arith.addf %10, %11 : vector<2x32xf32>
    %cst_11 = arith.constant 0.000000e+00 : f32
    %13 = vector.broadcast %cst_11 : f32 to vector<2x32xf32>
    %14 = arith.maximumf %12, %13 : vector<2x32xf32>
    %c0_12 = arith.constant 0 : index
    %c0_13 = arith.constant 0 : index
    %15 = vector.load %arg5[%c0_12, %c0_13] : memref<32x1xf32, #tpu.memory_space<vmem>>, vector<32x1xf32>
    %c0_14 = arith.constant 0 : index
    %c0_15 = arith.constant 0 : index
    %16 = vector.load %arg6[%c0_14, %c0_15] : memref<1x1xf32, #tpu.memory_space<vmem>>, vector<1x1xf32>
    %cst_16 = arith.constant dense<0.000000e+00> : vector<2x1xf32>
    %17 = tpu.matmul %14, %15, %cst_16 {dimension_numbers = #tpu.dot_dimension_numbers<[1], [0], [0], [1], [0, 0, 1, 1], [], []>} : vector<2x32xf32>, vector<32x1xf32>, vector<2x1xf32> -> vector<2x1xf32>
    %18 = vector.broadcast %16 : vector<1x1xf32> to vector<2x1xf32>
    %19 = arith.addf %17, %18 : vector<2x1xf32>
    %c0_17 = arith.constant 0 : index
    %c0_18 = arith.constant 0 : index
    %20 = vector.load %arg7[%c0_17, %c0_18] : memref<2x1xf32, #tpu.memory_space<vmem>>, vector<2x1xf32>
    tpu.vector_store %arg7[%c0_17, %c0_18], %19 {strides = array<i32>} : memref<2x1xf32, #tpu.memory_space<vmem>>, vector<2x1xf32>,
    return
  }
}

module attributes {stable_mosaic.version = 11 : i64} {
  func.func @kernel(%arg0: i32, %arg1: memref<1x64x8xf32, #tpu.memory_space<vmem>>, %arg2: memref<24x16xf32, #tpu.memory_space<vmem>>, %arg3: memref<48x16xf32, #tpu.memory_space<vmem>>, %arg4: memref<1x16xf32, #tpu.memory_space<vmem>>, %arg5: memref<1x16xf32, #tpu.memory_space<vmem>>, %arg6: memref<48x24xf32, #tpu.memory_space<vmem>>, %arg7: memref<72x24xf32, #tpu.memory_space<vmem>>, %arg8: memref<1x24xf32, #tpu.memory_space<vmem>>, %arg9: memref<1x24xf32, #tpu.memory_space<vmem>>, %arg10: memref<72x32xf32, #tpu.memory_space<vmem>>, %arg11: memref<96x32xf32, #tpu.memory_space<vmem>>, %arg12: memref<1x32xf32, #tpu.memory_space<vmem>>, %arg13: memref<1x32xf32, #tpu.memory_space<vmem>>, %arg14: memref<96x22xf32, #tpu.memory_space<vmem>>, %arg15: memref<66x22xf32, #tpu.memory_space<vmem>>, %arg16: memref<1x22xf32, #tpu.memory_space<vmem>>, %arg17: memref<1x22xf32, #tpu.memory_space<vmem>>, %arg18: memref<66x13xf32, #tpu.memory_space<vmem>>, %arg19: memref<39x13xf32, #tpu.memory_space<vmem>>, %arg20: memref<1x13xf32, #tpu.memory_space<vmem>>, %arg21: memref<1x13xf32, #tpu.memory_space<vmem>>, %arg22: memref<39x4xf32, #tpu.memory_space<vmem>>, %arg23: memref<12x4xf32, #tpu.memory_space<vmem>>, %arg24: memref<1x4xf32, #tpu.memory_space<vmem>>, %arg25: memref<1x4xf32, #tpu.memory_space<vmem>>, %arg26: memref<1x8x4xf32, #tpu.memory_space<vmem>>, %arg27: memref<32x16xf32, #tpu.memory_space<vmem>>, %arg28: memref<32x16xf32, #tpu.memory_space<vmem>>, %arg29: memref<16x24xf32, #tpu.memory_space<vmem>>, %arg30: memref<16x24xf32, #tpu.memory_space<vmem>>, %arg31: memref<8x32xf32, #tpu.memory_space<vmem>>, %arg32: memref<8x32xf32, #tpu.memory_space<vmem>>, %arg33: memref<8x22xf32, #tpu.memory_space<vmem>>, %arg34: memref<8x22xf32, #tpu.memory_space<vmem>>, %arg35: memref<8x13xf32, #tpu.memory_space<vmem>>, %arg36: memref<8x13xf32, #tpu.memory_space<vmem>>, %arg37: memref<8x4xf32, #tpu.memory_space<vmem>>) attributes {dimension_semantics = [#tpu.dimension_semantics<parallel>], iteration_bounds = array<i64: 2>, scalar_prefetch = 0 : i64, scratch_operands = 11 : i64, tpu.core_type = #tpu.core_type<tc>, window_params = [{transform_indices = @transform_0, window_bounds = array<i64: 1, 64, 8>}, {pipeline_mode = #tpu.pipeline_mode<synchronous>, transform_indices = @transform_1, window_bounds = array<i64: 24, 16>}, {pipeline_mode = #tpu.pipeline_mode<synchronous>, transform_indices = @transform_2, window_bounds = array<i64: 48, 16>}, {pipeline_mode = #tpu.pipeline_mode<synchronous>, transform_indices = @transform_3, window_bounds = array<i64: 1, 16>}, {pipeline_mode = #tpu.pipeline_mode<synchronous>, transform_indices = @transform_4, window_bounds = array<i64: 1, 16>}, {pipeline_mode = #tpu.pipeline_mode<synchronous>, transform_indices = @transform_5, window_bounds = array<i64: 48, 24>}, {pipeline_mode = #tpu.pipeline_mode<synchronous>, transform_indices = @transform_6, window_bounds = array<i64: 72, 24>}, {pipeline_mode = #tpu.pipeline_mode<synchronous>, transform_indices = @transform_7, window_bounds = array<i64: 1, 24>}, {pipeline_mode = #tpu.pipeline_mode<synchronous>, transform_indices = @transform_8, window_bounds = array<i64: 1, 24>}, {pipeline_mode = #tpu.pipeline_mode<synchronous>, transform_indices = @transform_9, window_bounds = array<i64: 72, 32>}, {pipeline_mode = #tpu.pipeline_mode<synchronous>, transform_indices = @transform_10, window_bounds = array<i64: 96, 32>}, {pipeline_mode = #tpu.pipeline_mode<synchronous>, transform_indices = @transform_11, window_bounds = array<i64: 1, 32>}, {pipeline_mode = #tpu.pipeline_mode<synchronous>, transform_indices = @transform_12, window_bounds = array<i64: 1, 32>}, {pipeline_mode = #tpu.pipeline_mode<synchronous>, transform_indices = @transform_13, window_bounds = array<i64: 96, 22>}, {pipeline_mode = #tpu.pipeline_mode<synchronous>, transform_indices = @transform_14, window_bounds = array<i64: 66, 22>}, {pipeline_mode = #tpu.pipeline_mode<synchronous>, transform_indices = @transform_15, window_bounds = array<i64: 1, 22>}, {pipeline_mode = #tpu.pipeline_mode<synchronous>, transform_indices = @transform_16, window_bounds = array<i64: 1, 22>}, {pipeline_mode = #tpu.pipeline_mode<synchronous>, transform_indices = @transform_17, window_bounds = array<i64: 66, 13>}, {pipeline_mode = #tpu.pipeline_mode<synchronous>, transform_indices = @transform_18, window_bounds = array<i64: 39, 13>}, {pipeline_mode = #tpu.pipeline_mode<synchronous>, transform_indices = @transform_19, window_bounds = array<i64: 1, 13>}, {pipeline_mode = #tpu.pipeline_mode<synchronous>, transform_indices = @transform_20, window_bounds = array<i64: 1, 13>}, {pipeline_mode = #tpu.pipeline_mode<synchronous>, transform_indices = @transform_21, window_bounds = array<i64: 39, 4>}, {pipeline_mode = #tpu.pipeline_mode<synchronous>, transform_indices = @transform_22, window_bounds = array<i64: 12, 4>}, {pipeline_mode = #tpu.pipeline_mode<synchronous>, transform_indices = @transform_23, window_bounds = array<i64: 1, 4>}, {pipeline_mode = #tpu.pipeline_mode<synchronous>, transform_indices = @transform_24, window_bounds = array<i64: 1, 4>}, {transform_indices = @transform_25, window_bounds = array<i64: 1, 8, 4>}]} {
    %cst = arith.constant 0.000000e+00 : f32
    %0 = vector.broadcast %cst : f32 to vector<1x8xf32>
    %c0 = arith.constant 0 : index
    %c1 = arith.constant 1 : index
    %c0_0 = arith.constant 0 : index
    %1 = tpu.strided_load %arg1[%c0, %c1, %c0_0] {strides = array<i32: 1, 2, 1>} : memref<1x64x8xf32, #tpu.memory_space<vmem>>, vector<1x32x8xf32>
    %2 = vector.shape_cast %1 : vector<1x32x8xf32> to vector<32x8xf32>
    %3 = vector.extract_strided_slice %2 {offsets = [0, 0], sizes = [31, 8], strides = [1, 1]} : vector<32x8xf32> to vector<31x8xf32>
    %4 = tpu.concatenate %0, %3 in 0 : vector<1x8xf32>, vector<31x8xf32> -> vector<32x8xf32>
    %c0_1 = arith.constant 0 : index
    %c0_2 = arith.constant 0 : index
    %c0_3 = arith.constant 0 : index
    %5 = tpu.strided_load %arg1[%c0_1, %c0_2, %c0_3] {strides = array<i32: 1, 2, 1>} : memref<1x64x8xf32, #tpu.memory_space<vmem>>, vector<1x32x8xf32>
    %6 = vector.shape_cast %5 : vector<1x32x8xf32> to vector<32x8xf32>
    %7 = tpu.concatenate %4, %6, %2 in 1 : vector<32x8xf32>, vector<32x8xf32>, vector<32x8xf32> -> vector<32x24xf32>
    %c0_4 = arith.constant 0 : index
    %c0_5 = arith.constant 0 : index
    %8 = vector.load %arg2[%c0_4, %c0_5] : memref<24x16xf32, #tpu.memory_space<vmem>>, vector<24x16xf32>
    %cst_6 = arith.constant dense<0.000000e+00> : vector<32x16xf32>
    %9 = tpu.matmul %7, %8, %cst_6 {dimension_numbers = #tpu.dot_dimension_numbers<[1], [0], [0], [1], [0, 0, 1, 1], [], []>} : vector<32x24xf32>, vector<24x16xf32>, vector<32x16xf32> -> vector<32x16xf32>
    %cst_7 = arith.constant 0.000000e+00 : f32
    %10 = vector.broadcast %cst_7 : f32 to vector<32x16xf32>
    %11 = arith.maximumf %9, %10 : vector<32x16xf32>
    %c0_8 = arith.constant 0 : index
    %c0_9 = arith.constant 0 : index
    %12 = vector.load %arg27[%c0_8, %c0_9] : memref<32x16xf32, #tpu.memory_space<vmem>>, vector<32x16xf32>
    tpu.vector_store %arg27[%c0_8, %c0_9], %11 {strides = array<i32>} : memref<32x16xf32, #tpu.memory_space<vmem>>, vector<32x16xf32>,
    %c0_10 = arith.constant 0 : index
    %c0_11 = arith.constant 0 : index
    %13 = vector.load %arg5[%c0_10, %c0_11] : memref<1x16xf32, #tpu.memory_space<vmem>>, vector<1x16xf32>
    %c0_12 = arith.constant 0 : index
    %c0_13 = arith.constant 0 : index
    %14 = vector.load %arg27[%c0_12, %c0_13] : memref<32x16xf32, #tpu.memory_space<vmem>>, vector<32x16xf32>
    %15 = vector.extract_strided_slice %14 {offsets = [0, 0], sizes = [31, 16], strides = [1, 1]} : vector<32x16xf32> to vector<31x16xf32>
    %16 = tpu.concatenate %13, %15 in 0 : vector<1x16xf32>, vector<31x16xf32> -> vector<32x16xf32>
    %17 = vector.extract_strided_slice %14 {offsets = [1, 0], sizes = [31, 16], strides = [1, 1]} : vector<32x16xf32> to vector<31x16xf32>
    %18 = tpu.concatenate %17, %13 in 0 : vector<31x16xf32>, vector<1x16xf32> -> vector<32x16xf32>
    %19 = tpu.concatenate %16, %14, %18 in 1 : vector<32x16xf32>, vector<32x16xf32>, vector<32x16xf32> -> vector<32x48xf32>
    %c0_14 = arith.constant 0 : index
    %c0_15 = arith.constant 0 : index
    %20 = vector.load %arg3[%c0_14, %c0_15] : memref<48x16xf32, #tpu.memory_space<vmem>>, vector<48x16xf32>
    %cst_16 = arith.constant dense<0.000000e+00> : vector<32x16xf32>
    %21 = tpu.matmul %19, %20, %cst_16 {dimension_numbers = #tpu.dot_dimension_numbers<[1], [0], [0], [1], [0, 0, 1, 1], [], []>} : vector<32x48xf32>, vector<48x16xf32>, vector<32x16xf32> -> vector<32x16xf32>
    %c0_17 = arith.constant 0 : index
    %c0_18 = arith.constant 0 : index
    %22 = vector.load %arg4[%c0_17, %c0_18] : memref<1x16xf32, #tpu.memory_space<vmem>>, vector<1x16xf32>
    %23 = vector.broadcast %22 : vector<1x16xf32> to vector<32x16xf32>
    %24 = arith.addf %21, %23 : vector<32x16xf32>
    %cst_19 = arith.constant 0.000000e+00 : f32
    %25 = vector.broadcast %cst_19 : f32 to vector<32x16xf32>
    %26 = arith.maximumf %24, %25 : vector<32x16xf32>
    %c0_20 = arith.constant 0 : index
    %c0_21 = arith.constant 0 : index
    %27 = vector.load %arg27[%c0_20, %c0_21] : memref<32x16xf32, #tpu.memory_space<vmem>>, vector<32x16xf32>
    %28 = arith.addf %26, %27 : vector<32x16xf32>
    %c0_22 = arith.constant 0 : index
    %c0_23 = arith.constant 0 : index
    %29 = vector.load %arg28[%c0_22, %c0_23] : memref<32x16xf32, #tpu.memory_space<vmem>>, vector<32x16xf32>
    tpu.vector_store %arg28[%c0_22, %c0_23], %28 {strides = array<i32>} : memref<32x16xf32, #tpu.memory_space<vmem>>, vector<32x16xf32>,
    %cst_24 = arith.constant 0.000000e+00 : f32
    %30 = vector.broadcast %cst_24 : f32 to vector<1x16xf32>
    %c1_25 = arith.constant 1 : index
    %c0_26 = arith.constant 0 : index
    %31 = tpu.strided_load %arg28[%c1_25, %c0_26] {strides = array<i32: 2, 1>} : memref<32x16xf32, #tpu.memory_space<vmem>>, vector<16x16xf32>
    %32 = vector.extract_strided_slice %31 {offsets = [0, 0], sizes = [15, 16], strides = [1, 1]} : vector<16x16xf32> to vector<15x16xf32>
    %33 = tpu.concatenate %30, %32 in 0 : vector<1x16xf32>, vector<15x16xf32> -> vector<16x16xf32>
    %c0_27 = arith.constant 0 : index
    %c0_28 = arith.constant 0 : index
    %34 = tpu.strided_load %arg28[%c0_27, %c0_28] {strides = array<i32: 2, 1>} : memref<32x16xf32, #tpu.memory_space<vmem>>, vector<16x16xf32>
    %35 = tpu.concatenate %33, %34, %31 in 1 : vector<16x16xf32>, vector<16x16xf32>, vector<16x16xf32> -> vector<16x48xf32>
    %c0_29 = arith.constant 0 : index
    %c0_30 = arith.constant 0 : index
    %36 = vector.load %arg6[%c0_29, %c0_30] : memref<48x24xf32, #tpu.memory_space<vmem>>, vector<48x24xf32>
    %cst_31 = arith.constant dense<0.000000e+00> : vector<16x24xf32>
    %37 = tpu.matmul %35, %36, %cst_31 {dimension_numbers = #tpu.dot_dimension_numbers<[1], [0], [0], [1], [0, 0, 1, 1], [], []>} : vector<16x48xf32>, vector<48x24xf32>, vector<16x24xf32> -> vector<16x24xf32>
    %cst_32 = arith.constant 0.000000e+00 : f32
    %38 = vector.broadcast %cst_32 : f32 to vector<16x24xf32>
    %39 = arith.maximumf %37, %38 : vector<16x24xf32>
    %c0_33 = arith.constant 0 : index
    %c0_34 = arith.constant 0 : index
    %40 = vector.load %arg29[%c0_33, %c0_34] : memref<16x24xf32, #tpu.memory_space<vmem>>, vector<16x24xf32>
    tpu.vector_store %arg29[%c0_33, %c0_34], %39 {strides = array<i32>} : memref<16x24xf32, #tpu.memory_space<vmem>>, vector<16x24xf32>,
    %c0_35 = arith.constant 0 : index
    %c0_36 = arith.constant 0 : index
    %41 = vector.load %arg9[%c0_35, %c0_36] : memref<1x24xf32, #tpu.memory_space<vmem>>, vector<1x24xf32>
    %c0_37 = arith.constant 0 : index
    %c0_38 = arith.constant 0 : index
    %42 = vector.load %arg29[%c0_37, %c0_38] : memref<16x24xf32, #tpu.memory_space<vmem>>, vector<16x24xf32>
    %43 = vector.extract_strided_slice %42 {offsets = [0, 0], sizes = [15, 24], strides = [1, 1]} : vector<16x24xf32> to vector<15x24xf32>
    %44 = tpu.concatenate %41, %43 in 0 : vector<1x24xf32>, vector<15x24xf32> -> vector<16x24xf32>
    %45 = vector.extract_strided_slice %42 {offsets = [1, 0], sizes = [15, 24], strides = [1, 1]} : vector<16x24xf32> to vector<15x24xf32>
    %46 = tpu.concatenate %45, %41 in 0 : vector<15x24xf32>, vector<1x24xf32> -> vector<16x24xf32>
    %47 = tpu.concatenate %44, %42, %46 in 1 : vector<16x24xf32>, vector<16x24xf32>, vector<16x24xf32> -> vector<16x72xf32>
    %c0_39 = arith.constant 0 : index
    %c0_40 = arith.constant 0 : index
    %48 = vector.load %arg7[%c0_39, %c0_40] : memref<72x24xf32, #tpu.memory_space<vmem>>, vector<72x24xf32>
    %cst_41 = arith.constant dense<0.000000e+00> : vector<16x24xf32>
    %49 = tpu.matmul %47, %48, %cst_41 {dimension_numbers = #tpu.dot_dimension_numbers<[1], [0], [0], [1], [0, 0, 1, 1], [], []>} : vector<16x72xf32>, vector<72x24xf32>, vector<16x24xf32> -> vector<16x24xf32>
    %c0_42 = arith.constant 0 : index
    %c0_43 = arith.constant 0 : index
    %50 = vector.load %arg8[%c0_42, %c0_43] : memref<1x24xf32, #tpu.memory_space<vmem>>, vector<1x24xf32>
    %51 = vector.broadcast %50 : vector<1x24xf32> to vector<16x24xf32>
    %52 = arith.addf %49, %51 : vector<16x24xf32>
    %cst_44 = arith.constant 0.000000e+00 : f32
    %53 = vector.broadcast %cst_44 : f32 to vector<16x24xf32>
    %54 = arith.maximumf %52, %53 : vector<16x24xf32>
    %c0_45 = arith.constant 0 : index
    %c0_46 = arith.constant 0 : index
    %55 = vector.load %arg29[%c0_45, %c0_46] : memref<16x24xf32, #tpu.memory_space<vmem>>, vector<16x24xf32>
    %56 = arith.addf %54, %55 : vector<16x24xf32>
    %c0_47 = arith.constant 0 : index
    %c0_48 = arith.constant 0 : index
    %57 = vector.load %arg30[%c0_47, %c0_48] : memref<16x24xf32, #tpu.memory_space<vmem>>, vector<16x24xf32>
    tpu.vector_store %arg30[%c0_47, %c0_48], %56 {strides = array<i32>} : memref<16x24xf32, #tpu.memory_space<vmem>>, vector<16x24xf32>,
    %cst_49 = arith.constant 0.000000e+00 : f32
    %58 = vector.broadcast %cst_49 : f32 to vector<1x24xf32>
    %c1_50 = arith.constant 1 : index
    %c0_51 = arith.constant 0 : index
    %59 = tpu.strided_load %arg30[%c1_50, %c0_51] {strides = array<i32: 2, 1>} : memref<16x24xf32, #tpu.memory_space<vmem>>, vector<8x24xf32>
    %60 = vector.extract_strided_slice %59 {offsets = [0, 0], sizes = [7, 24], strides = [1, 1]} : vector<8x24xf32> to vector<7x24xf32>
    %61 = tpu.concatenate %58, %60 in 0 : vector<1x24xf32>, vector<7x24xf32> -> vector<8x24xf32>
    %c0_52 = arith.constant 0 : index
    %c0_53 = arith.constant 0 : index
    %62 = tpu.strided_load %arg30[%c0_52, %c0_53] {strides = array<i32: 2, 1>} : memref<16x24xf32, #tpu.memory_space<vmem>>, vector<8x24xf32>
    %63 = tpu.concatenate %61, %62, %59 in 1 : vector<8x24xf32>, vector<8x24xf32>, vector<8x24xf32> -> vector<8x72xf32>
    %c0_54 = arith.constant 0 : index
    %c0_55 = arith.constant 0 : index
    %64 = vector.load %arg10[%c0_54, %c0_55] : memref<72x32xf32, #tpu.memory_space<vmem>>, vector<72x32xf32>
    %cst_56 = arith.constant dense<0.000000e+00> : vector<8x32xf32>
    %65 = tpu.matmul %63, %64, %cst_56 {dimension_numbers = #tpu.dot_dimension_numbers<[1], [0], [0], [1], [0, 0, 1, 1], [], []>} : vector<8x72xf32>, vector<72x32xf32>, vector<8x32xf32> -> vector<8x32xf32>
    %cst_57 = arith.constant 0.000000e+00 : f32
    %66 = vector.broadcast %cst_57 : f32 to vector<8x32xf32>
    %67 = arith.maximumf %65, %66 : vector<8x32xf32>
    %c0_58 = arith.constant 0 : index
    %c0_59 = arith.constant 0 : index
    %68 = vector.load %arg31[%c0_58, %c0_59] : memref<8x32xf32, #tpu.memory_space<vmem>>, vector<8x32xf32>
    tpu.vector_store %arg31[%c0_58, %c0_59], %67 {strides = array<i32>} : memref<8x32xf32, #tpu.memory_space<vmem>>, vector<8x32xf32>,
    %c0_60 = arith.constant 0 : index
    %c0_61 = arith.constant 0 : index
    %69 = vector.load %arg13[%c0_60, %c0_61] : memref<1x32xf32, #tpu.memory_space<vmem>>, vector<1x32xf32>
    %c0_62 = arith.constant 0 : index
    %c0_63 = arith.constant 0 : index
    %70 = vector.load %arg31[%c0_62, %c0_63] : memref<8x32xf32, #tpu.memory_space<vmem>>, vector<8x32xf32>
    %71 = vector.extract_strided_slice %70 {offsets = [0, 0], sizes = [7, 32], strides = [1, 1]} : vector<8x32xf32> to vector<7x32xf32>
    %72 = tpu.concatenate %69, %71 in 0 : vector<1x32xf32>, vector<7x32xf32> -> vector<8x32xf32>
    %73 = vector.extract_strided_slice %70 {offsets = [1, 0], sizes = [7, 32], strides = [1, 1]} : vector<8x32xf32> to vector<7x32xf32>
    %74 = tpu.concatenate %73, %69 in 0 : vector<7x32xf32>, vector<1x32xf32> -> vector<8x32xf32>
    %75 = tpu.concatenate %72, %70, %74 in 1 : vector<8x32xf32>, vector<8x32xf32>, vector<8x32xf32> -> vector<8x96xf32>
    %c0_64 = arith.constant 0 : index
    %c0_65 = arith.constant 0 : index
    %76 = vector.load %arg11[%c0_64, %c0_65] : memref<96x32xf32, #tpu.memory_space<vmem>>, vector<96x32xf32>
    %cst_66 = arith.constant dense<0.000000e+00> : vector<8x32xf32>
    %77 = tpu.matmul %75, %76, %cst_66 {dimension_numbers = #tpu.dot_dimension_numbers<[1], [0], [0], [1], [0, 0, 1, 1], [], []>} : vector<8x96xf32>, vector<96x32xf32>, vector<8x32xf32> -> vector<8x32xf32>
    %c0_67 = arith.constant 0 : index
    %c0_68 = arith.constant 0 : index
    %78 = vector.load %arg12[%c0_67, %c0_68] : memref<1x32xf32, #tpu.memory_space<vmem>>, vector<1x32xf32>
    %79 = vector.broadcast %78 : vector<1x32xf32> to vector<8x32xf32>
    %80 = arith.addf %77, %79 : vector<8x32xf32>
    %cst_69 = arith.constant 0.000000e+00 : f32
    %81 = vector.broadcast %cst_69 : f32 to vector<8x32xf32>
    %82 = arith.maximumf %80, %81 : vector<8x32xf32>
    %c0_70 = arith.constant 0 : index
    %c0_71 = arith.constant 0 : index
    %83 = vector.load %arg31[%c0_70, %c0_71] : memref<8x32xf32, #tpu.memory_space<vmem>>, vector<8x32xf32>
    %84 = arith.addf %82, %83 : vector<8x32xf32>
    %c0_72 = arith.constant 0 : index
    %c0_73 = arith.constant 0 : index
    %85 = vector.load %arg32[%c0_72, %c0_73] : memref<8x32xf32, #tpu.memory_space<vmem>>, vector<8x32xf32>
    tpu.vector_store %arg32[%c0_72, %c0_73], %84 {strides = array<i32>} : memref<8x32xf32, #tpu.memory_space<vmem>>, vector<8x32xf32>,
    %cst_74 = arith.constant 0.000000e+00 : f32
    %86 = vector.broadcast %cst_74 : f32 to vector<1x32xf32>
    %c0_75 = arith.constant 0 : index
    %c0_76 = arith.constant 0 : index
    %87 = vector.load %arg32[%c0_75, %c0_76] : memref<8x32xf32, #tpu.memory_space<vmem>>, vector<8x32xf32>
    %88 = vector.extract_strided_slice %87 {offsets = [0, 0], sizes = [7, 32], strides = [1, 1]} : vector<8x32xf32> to vector<7x32xf32>
    %89 = tpu.concatenate %86, %88 in 0 : vector<1x32xf32>, vector<7x32xf32> -> vector<8x32xf32>
    %90 = vector.extract_strided_slice %87 {offsets = [1, 0], sizes = [7, 32], strides = [1, 1]} : vector<8x32xf32> to vector<7x32xf32>
    %91 = tpu.concatenate %90, %86 in 0 : vector<7x32xf32>, vector<1x32xf32> -> vector<8x32xf32>
    %92 = tpu.concatenate %89, %87, %91 in 1 : vector<8x32xf32>, vector<8x32xf32>, vector<8x32xf32> -> vector<8x96xf32>
    %c0_77 = arith.constant 0 : index
    %c0_78 = arith.constant 0 : index
    %93 = vector.load %arg14[%c0_77, %c0_78] : memref<96x22xf32, #tpu.memory_space<vmem>>, vector<96x22xf32>
    %cst_79 = arith.constant dense<0.000000e+00> : vector<8x22xf32>
    %94 = tpu.matmul %92, %93, %cst_79 {dimension_numbers = #tpu.dot_dimension_numbers<[1], [0], [0], [1], [0, 0, 1, 1], [], []>} : vector<8x96xf32>, vector<96x22xf32>, vector<8x22xf32> -> vector<8x22xf32>
    %cst_80 = arith.constant 0.000000e+00 : f32
    %95 = vector.broadcast %cst_80 : f32 to vector<8x22xf32>
    %96 = arith.maximumf %94, %95 : vector<8x22xf32>
    %c0_81 = arith.constant 0 : index
    %c0_82 = arith.constant 0 : index
    %97 = vector.load %arg33[%c0_81, %c0_82] : memref<8x22xf32, #tpu.memory_space<vmem>>, vector<8x22xf32>
    tpu.vector_store %arg33[%c0_81, %c0_82], %96 {strides = array<i32>} : memref<8x22xf32, #tpu.memory_space<vmem>>, vector<8x22xf32>,
    %c0_83 = arith.constant 0 : index
    %c0_84 = arith.constant 0 : index
    %98 = vector.load %arg17[%c0_83, %c0_84] : memref<1x22xf32, #tpu.memory_space<vmem>>, vector<1x22xf32>
    %c0_85 = arith.constant 0 : index
    %c0_86 = arith.constant 0 : index
    %99 = vector.load %arg33[%c0_85, %c0_86] : memref<8x22xf32, #tpu.memory_space<vmem>>, vector<8x22xf32>
    %100 = vector.extract_strided_slice %99 {offsets = [0, 0], sizes = [7, 22], strides = [1, 1]} : vector<8x22xf32> to vector<7x22xf32>
    %101 = tpu.concatenate %98, %100 in 0 : vector<1x22xf32>, vector<7x22xf32> -> vector<8x22xf32>
    %102 = vector.extract_strided_slice %99 {offsets = [1, 0], sizes = [7, 22], strides = [1, 1]} : vector<8x22xf32> to vector<7x22xf32>
    %103 = tpu.concatenate %102, %98 in 0 : vector<7x22xf32>, vector<1x22xf32> -> vector<8x22xf32>
    %104 = tpu.concatenate %101, %99, %103 in 1 : vector<8x22xf32>, vector<8x22xf32>, vector<8x22xf32> -> vector<8x66xf32>
    %c0_87 = arith.constant 0 : index
    %c0_88 = arith.constant 0 : index
    %105 = vector.load %arg15[%c0_87, %c0_88] : memref<66x22xf32, #tpu.memory_space<vmem>>, vector<66x22xf32>
    %cst_89 = arith.constant dense<0.000000e+00> : vector<8x22xf32>
    %106 = tpu.matmul %104, %105, %cst_89 {dimension_numbers = #tpu.dot_dimension_numbers<[1], [0], [0], [1], [0, 0, 1, 1], [], []>} : vector<8x66xf32>, vector<66x22xf32>, vector<8x22xf32> -> vector<8x22xf32>
    %c0_90 = arith.constant 0 : index
    %c0_91 = arith.constant 0 : index
    %107 = vector.load %arg16[%c0_90, %c0_91] : memref<1x22xf32, #tpu.memory_space<vmem>>, vector<1x22xf32>
    %108 = vector.broadcast %107 : vector<1x22xf32> to vector<8x22xf32>
    %109 = arith.addf %106, %108 : vector<8x22xf32>
    %cst_92 = arith.constant 0.000000e+00 : f32
    %110 = vector.broadcast %cst_92 : f32 to vector<8x22xf32>
    %111 = arith.maximumf %109, %110 : vector<8x22xf32>
    %c0_93 = arith.constant 0 : index
    %c0_94 = arith.constant 0 : index
    %112 = vector.load %arg33[%c0_93, %c0_94] : memref<8x22xf32, #tpu.memory_space<vmem>>, vector<8x22xf32>
    %113 = arith.addf %111, %112 : vector<8x22xf32>
    %c0_95 = arith.constant 0 : index
    %c0_96 = arith.constant 0 : index
    %114 = vector.load %arg34[%c0_95, %c0_96] : memref<8x22xf32, #tpu.memory_space<vmem>>, vector<8x22xf32>
    tpu.vector_store %arg34[%c0_95, %c0_96], %113 {strides = array<i32>} : memref<8x22xf32, #tpu.memory_space<vmem>>, vector<8x22xf32>,
    %cst_97 = arith.constant 0.000000e+00 : f32
    %115 = vector.broadcast %cst_97 : f32 to vector<1x22xf32>
    %c0_98 = arith.constant 0 : index
    %c0_99 = arith.constant 0 : index
    %116 = vector.load %arg34[%c0_98, %c0_99] : memref<8x22xf32, #tpu.memory_space<vmem>>, vector<8x22xf32>
    %117 = vector.extract_strided_slice %116 {offsets = [0, 0], sizes = [7, 22], strides = [1, 1]} : vector<8x22xf32> to vector<7x22xf32>
    %118 = tpu.concatenate %115, %117 in 0 : vector<1x22xf32>, vector<7x22xf32> -> vector<8x22xf32>
    %119 = vector.extract_strided_slice %116 {offsets = [1, 0], sizes = [7, 22], strides = [1, 1]} : vector<8x22xf32> to vector<7x22xf32>
    %120 = tpu.concatenate %119, %115 in 0 : vector<7x22xf32>, vector<1x22xf32> -> vector<8x22xf32>
    %121 = tpu.concatenate %118, %116, %120 in 1 : vector<8x22xf32>, vector<8x22xf32>, vector<8x22xf32> -> vector<8x66xf32>
    %c0_100 = arith.constant 0 : index
    %c0_101 = arith.constant 0 : index
    %122 = vector.load %arg18[%c0_100, %c0_101] : memref<66x13xf32, #tpu.memory_space<vmem>>, vector<66x13xf32>
    %cst_102 = arith.constant dense<0.000000e+00> : vector<8x13xf32>
    %123 = tpu.matmul %121, %122, %cst_102 {dimension_numbers = #tpu.dot_dimension_numbers<[1], [0], [0], [1], [0, 0, 1, 1], [], []>} : vector<8x66xf32>, vector<66x13xf32>, vector<8x13xf32> -> vector<8x13xf32>
    %cst_103 = arith.constant 0.000000e+00 : f32
    %124 = vector.broadcast %cst_103 : f32 to vector<8x13xf32>
    %125 = arith.maximumf %123, %124 : vector<8x13xf32>
    %c0_104 = arith.constant 0 : index
    %c0_105 = arith.constant 0 : index
    %126 = vector.load %arg35[%c0_104, %c0_105] : memref<8x13xf32, #tpu.memory_space<vmem>>, vector<8x13xf32>
    tpu.vector_store %arg35[%c0_104, %c0_105], %125 {strides = array<i32>} : memref<8x13xf32, #tpu.memory_space<vmem>>, vector<8x13xf32>,
    %c0_106 = arith.constant 0 : index
    %c0_107 = arith.constant 0 : index
    %127 = vector.load %arg21[%c0_106, %c0_107] : memref<1x13xf32, #tpu.memory_space<vmem>>, vector<1x13xf32>
    %c0_108 = arith.constant 0 : index
    %c0_109 = arith.constant 0 : index
    %128 = vector.load %arg35[%c0_108, %c0_109] : memref<8x13xf32, #tpu.memory_space<vmem>>, vector<8x13xf32>
    %129 = vector.extract_strided_slice %128 {offsets = [0, 0], sizes = [7, 13], strides = [1, 1]} : vector<8x13xf32> to vector<7x13xf32>
    %130 = tpu.concatenate %127, %129 in 0 : vector<1x13xf32>, vector<7x13xf32> -> vector<8x13xf32>
    %131 = vector.extract_strided_slice %128 {offsets = [1, 0], sizes = [7, 13], strides = [1, 1]} : vector<8x13xf32> to vector<7x13xf32>
    %132 = tpu.concatenate %131, %127 in 0 : vector<7x13xf32>, vector<1x13xf32> -> vector<8x13xf32>
    %133 = tpu.concatenate %130, %128, %132 in 1 : vector<8x13xf32>, vector<8x13xf32>, vector<8x13xf32> -> vector<8x39xf32>
    %c0_110 = arith.constant 0 : index
    %c0_111 = arith.constant 0 : index
    %134 = vector.load %arg19[%c0_110, %c0_111] : memref<39x13xf32, #tpu.memory_space<vmem>>, vector<39x13xf32>
    %cst_112 = arith.constant dense<0.000000e+00> : vector<8x13xf32>
    %135 = tpu.matmul %133, %134, %cst_112 {dimension_numbers = #tpu.dot_dimension_numbers<[1], [0], [0], [1], [0, 0, 1, 1], [], []>} : vector<8x39xf32>, vector<39x13xf32>, vector<8x13xf32> -> vector<8x13xf32>
    %c0_113 = arith.constant 0 : index
    %c0_114 = arith.constant 0 : index
    %136 = vector.load %arg20[%c0_113, %c0_114] : memref<1x13xf32, #tpu.memory_space<vmem>>, vector<1x13xf32>
    %137 = vector.broadcast %136 : vector<1x13xf32> to vector<8x13xf32>
    %138 = arith.addf %135, %137 : vector<8x13xf32>
    %cst_115 = arith.constant 0.000000e+00 : f32
    %139 = vector.broadcast %cst_115 : f32 to vector<8x13xf32>
    %140 = arith.maximumf %138, %139 : vector<8x13xf32>
    %c0_116 = arith.constant 0 : index
    %c0_117 = arith.constant 0 : index
    %141 = vector.load %arg35[%c0_116, %c0_117] : memref<8x13xf32, #tpu.memory_space<vmem>>, vector<8x13xf32>
    %142 = arith.addf %140, %141 : vector<8x13xf32>
    %c0_118 = arith.constant 0 : index
    %c0_119 = arith.constant 0 : index
    %143 = vector.load %arg36[%c0_118, %c0_119] : memref<8x13xf32, #tpu.memory_space<vmem>>, vector<8x13xf32>
    tpu.vector_store %arg36[%c0_118, %c0_119], %142 {strides = array<i32>} : memref<8x13xf32, #tpu.memory_space<vmem>>, vector<8x13xf32>,
    %cst_120 = arith.constant 0.000000e+00 : f32
    %144 = vector.broadcast %cst_120 : f32 to vector<1x13xf32>
    %c0_121 = arith.constant 0 : index
    %c0_122 = arith.constant 0 : index
    %145 = vector.load %arg36[%c0_121, %c0_122] : memref<8x13xf32, #tpu.memory_space<vmem>>, vector<8x13xf32>
    %146 = vector.extract_strided_slice %145 {offsets = [0, 0], sizes = [7, 13], strides = [1, 1]} : vector<8x13xf32> to vector<7x13xf32>
    %147 = tpu.concatenate %144, %146 in 0 : vector<1x13xf32>, vector<7x13xf32> -> vector<8x13xf32>
    %148 = vector.extract_strided_slice %145 {offsets = [1, 0], sizes = [7, 13], strides = [1, 1]} : vector<8x13xf32> to vector<7x13xf32>
    %149 = tpu.concatenate %148, %144 in 0 : vector<7x13xf32>, vector<1x13xf32> -> vector<8x13xf32>
    %150 = tpu.concatenate %147, %145, %149 in 1 : vector<8x13xf32>, vector<8x13xf32>, vector<8x13xf32> -> vector<8x39xf32>
    %c0_123 = arith.constant 0 : index
    %c0_124 = arith.constant 0 : index
    %151 = vector.load %arg22[%c0_123, %c0_124] : memref<39x4xf32, #tpu.memory_space<vmem>>, vector<39x4xf32>
    %cst_125 = arith.constant dense<0.000000e+00> : vector<8x4xf32>
    %152 = tpu.matmul %150, %151, %cst_125 {dimension_numbers = #tpu.dot_dimension_numbers<[1], [0], [0], [1], [0, 0, 1, 1], [], []>} : vector<8x39xf32>, vector<39x4xf32>, vector<8x4xf32> -> vector<8x4xf32>
    %cst_126 = arith.constant 0.000000e+00 : f32
    %153 = vector.broadcast %cst_126 : f32 to vector<8x4xf32>
    %154 = arith.maximumf %152, %153 : vector<8x4xf32>
    %c0_127 = arith.constant 0 : index
    %c0_128 = arith.constant 0 : index
    %155 = vector.load %arg37[%c0_127, %c0_128] : memref<8x4xf32, #tpu.memory_space<vmem>>, vector<8x4xf32>
    tpu.vector_store %arg37[%c0_127, %c0_128], %154 {strides = array<i32>} : memref<8x4xf32, #tpu.memory_space<vmem>>, vector<8x4xf32>,
    %c0_129 = arith.constant 0 : index
    %c0_130 = arith.constant 0 : index
    %156 = vector.load %arg25[%c0_129, %c0_130] : memref<1x4xf32, #tpu.memory_space<vmem>>, vector<1x4xf32>
    %c0_131 = arith.constant 0 : index
    %c0_132 = arith.constant 0 : index
    %157 = vector.load %arg37[%c0_131, %c0_132] : memref<8x4xf32, #tpu.memory_space<vmem>>, vector<8x4xf32>
    %158 = vector.extract_strided_slice %157 {offsets = [0, 0], sizes = [7, 4], strides = [1, 1]} : vector<8x4xf32> to vector<7x4xf32>
    %159 = tpu.concatenate %156, %158 in 0 : vector<1x4xf32>, vector<7x4xf32> -> vector<8x4xf32>
    %160 = vector.extract_strided_slice %157 {offsets = [1, 0], sizes = [7, 4], strides = [1, 1]} : vector<8x4xf32> to vector<7x4xf32>
    %161 = tpu.concatenate %160, %156 in 0 : vector<7x4xf32>, vector<1x4xf32> -> vector<8x4xf32>
    %162 = tpu.concatenate %159, %157, %161 in 1 : vector<8x4xf32>, vector<8x4xf32>, vector<8x4xf32> -> vector<8x12xf32>
    %c0_133 = arith.constant 0 : index
    %c0_134 = arith.constant 0 : index
    %163 = vector.load %arg23[%c0_133, %c0_134] : memref<12x4xf32, #tpu.memory_space<vmem>>, vector<12x4xf32>
    %cst_135 = arith.constant dense<0.000000e+00> : vector<8x4xf32>
    %164 = tpu.matmul %162, %163, %cst_135 {dimension_numbers = #tpu.dot_dimension_numbers<[1], [0], [0], [1], [0, 0, 1, 1], [], []>} : vector<8x12xf32>, vector<12x4xf32>, vector<8x4xf32> -> vector<8x4xf32>
    %c0_136 = arith.constant 0 : index
    %c0_137 = arith.constant 0 : index
    %165 = vector.load %arg24[%c0_136, %c0_137] : memref<1x4xf32, #tpu.memory_space<vmem>>, vector<1x4xf32>
    %166 = vector.broadcast %165 : vector<1x4xf32> to vector<8x4xf32>
    %167 = arith.addf %164, %166 : vector<8x4xf32>
    %cst_138 = arith.constant 0.000000e+00 : f32
    %168 = vector.broadcast %cst_138 : f32 to vector<8x4xf32>
    %169 = arith.maximumf %167, %168 : vector<8x4xf32>
    %c0_139 = arith.constant 0 : index
    %c0_140 = arith.constant 0 : index
    %170 = vector.load %arg37[%c0_139, %c0_140] : memref<8x4xf32, #tpu.memory_space<vmem>>, vector<8x4xf32>
    %171 = arith.addf %169, %170 : vector<8x4xf32>
    %c0_141 = arith.constant 0 : index
    %c0_142 = arith.constant 0 : index
    %c0_143 = arith.constant 0 : index
    %172 = vector.load %arg26[%c0_141, %c0_142, %c0_143] : memref<1x8x4xf32, #tpu.memory_space<vmem>>, vector<1x8x4xf32>
    %173 = vector.shape_cast %172 : vector<1x8x4xf32> to vector<8x4xf32>
    %174 = vector.shape_cast %171 : vector<8x4xf32> to vector<1x8x4xf32>
    tpu.vector_store %arg26[%c0_141, %c0_142, %c0_143], %174 {strides = array<i32>} : memref<1x8x4xf32, #tpu.memory_space<vmem>>, vector<1x8x4xf32>,
    return
  }
  func.func @transform_0(%arg0: i32) -> (i32, i32, i32) {
    %c0_i32 = arith.constant 0 : i32
    %c0_i32_0 = arith.constant 0 : i32
    %c0_i32_1 = arith.constant 0 : i32
    return %arg0, %c0_i32, %c0_i32_0 : i32, i32, i32
  }
  func.func @transform_1(%arg0: i32) -> (i32, i32) {
    %c0_i32 = arith.constant 0 : i32
    %c0_i32_0 = arith.constant 0 : i32
    %c0_i32_1 = arith.constant 0 : i32
    return %c0_i32, %c0_i32_0 : i32, i32
  }
  func.func @transform_2(%arg0: i32) -> (i32, i32) {
    %c0_i32 = arith.constant 0 : i32
    %c0_i32_0 = arith.constant 0 : i32
    %c0_i32_1 = arith.constant 0 : i32
    return %c0_i32, %c0_i32_0 : i32, i32
  }
  func.func @transform_3(%arg0: i32) -> (i32, i32) {
    %c0_i32 = arith.constant 0 : i32
    %c0_i32_0 = arith.constant 0 : i32
    %c0_i32_1 = arith.constant 0 : i32
    return %c0_i32, %c0_i32_0 : i32, i32
  }
  func.func @transform_4(%arg0: i32) -> (i32, i32) {
    %c0_i32 = arith.constant 0 : i32
    %c0_i32_0 = arith.constant 0 : i32
    %c0_i32_1 = arith.constant 0 : i32
    return %c0_i32, %c0_i32_0 : i32, i32
  }
  func.func @transform_5(%arg0: i32) -> (i32, i32) {
    %c0_i32 = arith.constant 0 : i32
    %c0_i32_0 = arith.constant 0 : i32
    %c0_i32_1 = arith.constant 0 : i32
    return %c0_i32, %c0_i32_0 : i32, i32
  }
  func.func @transform_6(%arg0: i32) -> (i32, i32) {
    %c0_i32 = arith.constant 0 : i32
    %c0_i32_0 = arith.constant 0 : i32
    %c0_i32_1 = arith.constant 0 : i32
    return %c0_i32, %c0_i32_0 : i32, i32
  }
  func.func @transform_7(%arg0: i32) -> (i32, i32) {
    %c0_i32 = arith.constant 0 : i32
    %c0_i32_0 = arith.constant 0 : i32
    %c0_i32_1 = arith.constant 0 : i32
    return %c0_i32, %c0_i32_0 : i32, i32
  }
  func.func @transform_8(%arg0: i32) -> (i32, i32) {
    %c0_i32 = arith.constant 0 : i32
    %c0_i32_0 = arith.constant 0 : i32
    %c0_i32_1 = arith.constant 0 : i32
    return %c0_i32, %c0_i32_0 : i32, i32
  }
  func.func @transform_9(%arg0: i32) -> (i32, i32) {
    %c0_i32 = arith.constant 0 : i32
    %c0_i32_0 = arith.constant 0 : i32
    %c0_i32_1 = arith.constant 0 : i32
    return %c0_i32, %c0_i32_0 : i32, i32
  }
  func.func @transform_10(%arg0: i32) -> (i32, i32) {
    %c0_i32 = arith.constant 0 : i32
    %c0_i32_0 = arith.constant 0 : i32
    %c0_i32_1 = arith.constant 0 : i32
    return %c0_i32, %c0_i32_0 : i32, i32
  }
  func.func @transform_11(%arg0: i32) -> (i32, i32) {
    %c0_i32 = arith.constant 0 : i32
    %c0_i32_0 = arith.constant 0 : i32
    %c0_i32_1 = arith.constant 0 : i32
    return %c0_i32, %c0_i32_0 : i32, i32
  }
  func.func @transform_12(%arg0: i32) -> (i32, i32) {
    %c0_i32 = arith.constant 0 : i32
    %c0_i32_0 = arith.constant 0 : i32
    %c0_i32_1 = arith.constant 0 : i32
    return %c0_i32, %c0_i32_0 : i32, i32
  }
  func.func @transform_13(%arg0: i32) -> (i32, i32) {
    %c0_i32 = arith.constant 0 : i32
    %c0_i32_0 = arith.constant 0 : i32
    %c0_i32_1 = arith.constant 0 : i32
    return %c0_i32, %c0_i32_0 : i32, i32
  }
  func.func @transform_14(%arg0: i32) -> (i32, i32) {
    %c0_i32 = arith.constant 0 : i32
    %c0_i32_0 = arith.constant 0 : i32
    %c0_i32_1 = arith.constant 0 : i32
    return %c0_i32, %c0_i32_0 : i32, i32
  }
  func.func @transform_15(%arg0: i32) -> (i32, i32) {
    %c0_i32 = arith.constant 0 : i32
    %c0_i32_0 = arith.constant 0 : i32
    %c0_i32_1 = arith.constant 0 : i32
    return %c0_i32, %c0_i32_0 : i32, i32
  }
  func.func @transform_16(%arg0: i32) -> (i32, i32) {
    %c0_i32 = arith.constant 0 : i32
    %c0_i32_0 = arith.constant 0 : i32
    %c0_i32_1 = arith.constant 0 : i32
    return %c0_i32, %c0_i32_0 : i32, i32
  }
  func.func @transform_17(%arg0: i32) -> (i32, i32) {
    %c0_i32 = arith.constant 0 : i32
    %c0_i32_0 = arith.constant 0 : i32
    %c0_i32_1 = arith.constant 0 : i32
    return %c0_i32, %c0_i32_0 : i32, i32
  }
  func.func @transform_18(%arg0: i32) -> (i32, i32) {
    %c0_i32 = arith.constant 0 : i32
    %c0_i32_0 = arith.constant 0 : i32
    %c0_i32_1 = arith.constant 0 : i32
    return %c0_i32, %c0_i32_0 : i32, i32
  }
  func.func @transform_19(%arg0: i32) -> (i32, i32) {
    %c0_i32 = arith.constant 0 : i32
    %c0_i32_0 = arith.constant 0 : i32
    %c0_i32_1 = arith.constant 0 : i32
    return %c0_i32, %c0_i32_0 : i32, i32
  }
  func.func @transform_20(%arg0: i32) -> (i32, i32) {
    %c0_i32 = arith.constant 0 : i32
    %c0_i32_0 = arith.constant 0 : i32
    %c0_i32_1 = arith.constant 0 : i32
    return %c0_i32, %c0_i32_0 : i32, i32
  }
  func.func @transform_21(%arg0: i32) -> (i32, i32) {
    %c0_i32 = arith.constant 0 : i32
    %c0_i32_0 = arith.constant 0 : i32
    %c0_i32_1 = arith.constant 0 : i32
    return %c0_i32, %c0_i32_0 : i32, i32
  }
  func.func @transform_22(%arg0: i32) -> (i32, i32) {
    %c0_i32 = arith.constant 0 : i32
    %c0_i32_0 = arith.constant 0 : i32
    %c0_i32_1 = arith.constant 0 : i32
    return %c0_i32, %c0_i32_0 : i32, i32
  }
  func.func @transform_23(%arg0: i32) -> (i32, i32) {
    %c0_i32 = arith.constant 0 : i32
    %c0_i32_0 = arith.constant 0 : i32
    %c0_i32_1 = arith.constant 0 : i32
    return %c0_i32, %c0_i32_0 : i32, i32
  }
  func.func @transform_24(%arg0: i32) -> (i32, i32) {
    %c0_i32 = arith.constant 0 : i32
    %c0_i32_0 = arith.constant 0 : i32
    %c0_i32_1 = arith.constant 0 : i32
    return %c0_i32, %c0_i32_0 : i32, i32
  }
  func.func @transform_25(%arg0: i32) -> (i32, i32, i32) {
    %c0_i32 = arith.constant 0 : i32
    %c0_i32_0 = arith.constant 0 : i32
    %c0_i32_1 = arith.constant 0 : i32
    return %arg0, %c0_i32, %c0_i32_0 : i32, i32, i32
  }
}

</mosaic_0001>

<llo_original>
// kernel: _lambda_.3
$region0: #{_lambda_.3}
  #allocation0 [shape = 'u32[]', space=smem, size = 0x4, offset = 0x4, fixed_abs, tag = 'smem constant byte address 0x4 - core index']
  #allocation1 [shape = 'u32[72,128]{1,0:T(1,128)}', space=vmem, size = 0x9000, scoped, tag = 'internal scratch']
  #allocation2 [shape = 'f32[1,1]{1,0:T(1,128)S(1)}', space=vmem, size = 0x200, scoped, tag = 'scoped memory for _lambda_.3']
  %s0 = inlined_call_operand.vmem [shape: f32[2,32], index: 0, kind: input, shape index: {}]
  %s1 = inlined_call_operand.hbm [shape: f32[32,32], index: 1, kind: input, shape index: {}]
  %s2 = inlined_call_operand.hbm [shape: f32[1,32], index: 2, kind: input, shape index: {}]
  %s3 = inlined_call_operand.hbm [shape: f32[32,32], index: 3, kind: input, shape index: {}]
  %s4 = inlined_call_operand.vmem [shape: f32[1,32], index: 4, kind: input, shape index: {}]
  %s5 = inlined_call_operand.vmem [shape: f32[32,1], index: 5, kind: input, shape index: {}]
  %s6 = inlined_call_operand.<no memory space> [shape: f32[1,1], index: 6, kind: input, shape index: {}]
  %s7 = inlined_call_operand.vmem [shape: f32[2,1], index: 7, kind: output, shape index: {}]
  %s8 = sld [smem:[#allocation0]]
  $region50: #{_lambda_.3} parent=0
    _
  %s10 = ssub.s32 1, %s8
  %s11 = scalar_select 0, %s10, %s8
  %v12 = vstv %s6
  %13 = vst [vmem:[#allocation2] sm:$0x1] %v12
  $region1: #{_lambda_.3} parent=0
    #allocation3 [shape = 'u8[16384]{0}', space=vmem, size = 0x4000, scoped, tag = 'input window, operand 1, single buffered']
    #allocation4 [shape = 's32[1]{0}', space=sflag, size = 0x4, scoped, tag = 'scoped memory for _lambda_.3']
    #allocation5 [shape = 'u8[512]{0}', space=vmem, size = 0x400, scoped, tag = 'input window, operand 2, single buffered']
    #allocation6 [shape = 's32[1]{0}', space=sflag, size = 0x4, scoped, tag = 'scoped memory for _lambda_.3']
    #allocation7 [shape = 'u8[16384]{0}', space=vmem, size = 0x4000, scoped, tag = 'input window, operand 3, single buffered']
    %14 = vsyncpa [#allocation4], 0
    %15 = vsyncpa [#allocation6], 0
    // Predicated region
    $region2: #{_lambda_.3} parent=1 // pred_check
      _
    $region3: #{_lambda_.3} parent=1 // pred_check_branch
      %17 = sbr.rel (0) target = $region5
    $region4: #{_lambda_.3} parent=1 // pred_region
      _
    $region5: #{_lambda_.3} parent=1 // pred_fallthru
      _
    // Predicated region
    $region6: #{_lambda_.3} parent=1 // pred_check
      _
    $region7: #{_lambda_.3} parent=1 // pred_check_branch
      %19 = sbr.rel (0) target = $region9
    $region8: #{_lambda_.3} parent=1 // pred_region
      %21 = vsyncadd [#allocation4], 0
      %s22 = sshll.u32 %s1, 4
      %s23 = int_to_ptr.hbm [resolvable:$true] %s22
      %s24 = sshll.u32 [#allocation3], 4
      %s25 = int_to_ptr.vmem [resolvable:$true] %s24
      %30 = dma.hbm_to_vmem [thread:$0]  %s23, 512, %s25, [#allocation4], 128, 128, 8
    $region9: #{_lambda_.3} parent=1 // pred_fallthru
      _
    // Predicated region
    $region10: #{_lambda_.3} parent=1 // pred_check
      _
    $region11: #{_lambda_.3} parent=1 // pred_check_branch
      %32 = sbr.rel (0) target = $region13
    $region12: #{_lambda_.3} parent=1 // pred_region
      %34 = vsyncadd [#allocation6], 0
      %s36 = sshll.u32 %s2, 4
      %s37 = int_to_ptr.hbm [resolvable:$true] %s36
      %s38 = sshll.u32 [#allocation5], 4
      %s39 = int_to_ptr.vmem [resolvable:$true] %s38
      %41 = dma.hbm_to_vmem [thread:$0]  %s37, 16, %s39, [#allocation6]
    $region13: #{_lambda_.3} parent=1 // pred_fallthru
      _
    // Predicated region
    $region14: #{_lambda_.3} parent=1 // pred_check
      _
    $region15: #{_lambda_.3} parent=1 // pred_check_branch
      %43 = sbr.rel (0) target = $region17
    $region16: #{_lambda_.3} parent=1 // pred_region
      %45 = vsyncadd [#allocation6], 0
      %s46 = sshll.u32 %s3, 4
      %s47 = int_to_ptr.hbm [resolvable:$true] %s46
      %s48 = sshll.u32 [#allocation7], 4
      %s49 = int_to_ptr.vmem [resolvable:$true] %s48
      %54 = dma.hbm_to_vmem [thread:$0]  %s47, 512, %s49, [#allocation6], 128, 128, 8
    $region17: #{_lambda_.3} parent=1 // pred_fallthru
      _
    // Predicated region
    $region18: #{_lambda_.3} parent=1 // pred_check
      _
    $region19: #{_lambda_.3} parent=1 // pred_check_branch
      %56 = sbr.rel (0) target = $region21
    $region20: #{_lambda_.3} parent=1 // pred_region
      _
    $region21: #{_lambda_.3} parent=1 // pred_fallthru
      _
    // Predicated region
    $region22: #{_lambda_.3} parent=1 // pred_check
      _
    $region23: #{_lambda_.3} parent=1 // pred_check_branch
      %58 = sbr.rel (0) target = $region25
    $region24: #{_lambda_.3} parent=1 // pred_region
      _
    $region25: #{_lambda_.3} parent=1 // pred_fallthru
      _
    // Predicated region
    $region26: #{_lambda_.3} parent=1 // pred_check
      _
    $region27: #{_lambda_.3} parent=1 // pred_check_branch
      %60 = sbr.rel (0) target = $region29
    $region28: #{_lambda_.3} parent=1 // pred_region
      _
    $region29: #{_lambda_.3} parent=1 // pred_fallthru
      _
    // Predicated region
    $region30: #{_lambda_.3} parent=1 // pred_check
      _
    $region31: #{_lambda_.3} parent=1 // pred_check_branch
      %62 = sbr.rel (0) target = $region33
    $region32: #{_lambda_.3} parent=1 // pred_region
      %64 = dma.done [#allocation4], 512
    $region33: #{_lambda_.3} parent=1 // pred_fallthru
      _
    // Predicated region
    $region34: #{_lambda_.3} parent=1 // pred_check
      _
    $region35: #{_lambda_.3} parent=1 // pred_check_branch
      %66 = sbr.rel (0) target = $region37
    $region36: #{_lambda_.3} parent=1 // pred_region
      %68 = dma.done [#allocation6], 16
    $region37: #{_lambda_.3} parent=1 // pred_fallthru
      _
    // Predicated region
    $region38: #{_lambda_.3} parent=1 // pred_check
      _
    $region39: #{_lambda_.3} parent=1 // pred_check_branch
      %70 = sbr.rel (0) target = $region41
    $region40: #{_lambda_.3} parent=1 // pred_region
      %72 = dma.done [#allocation6], 512
    $region41: #{_lambda_.3} parent=1 // pred_fallthru
      _
    %v73 = vld [vmem:[%s0] sm:$0x3]
    %v74 = vld [vmem:[#allocation3] sm:$0xff]
    %v75 = vld [vmem:[#allocation3 + $0x8] sm:$0xff]
    %v76 = vld [vmem:[#allocation3 + $0x10] sm:$0xff]
    %v77 = vld [vmem:[#allocation3 + $0x18] sm:$0xff]
    %v78 = vld [vmem:[#allocation5] sm:$0x1]
    %v80 = vperm.slane %v78, 0
    %vm82 = vcmask 261120
    %v84 = vsel %vm82, %v73, 0
    %86 = vmatpush.msra.mxu0 0.0
    %87 = vmatpush.msra.mxu0 0.0
    %88 = vmatpush.msra.mxu0 0.0
    %89 = vmatpush.msra.mxu0 0.0
    %90 = vmatpush.msra.mxu0 0.0
    %91 = vmatpush.msra.mxu0 0.0
    %92 = vmatpush.msra.mxu0 0.0
    %93 = vmatpush.msra.mxu0 0.0
    %94 = vmatpush.msra.mxu0 0.0
    %95 = vmatpush.msra.mxu0 0.0
    %96 = vmatpush.msra.mxu0 0.0
    %97 = vmatpush.msra.mxu0 0.0
    %98 = vmatpush.msra.mxu0 %v77
    %99 = vmatpush.msra.mxu0 %v76
    %100 = vmatpush.msra.mxu0 %v75
    %101 = vmatpush.msra.mxu0 %v74
    %102 = vmatmul.f32.gmra.mxu0 %v84
    %v103 = vpop.f32.mrf.mxu0
    %v104 = vadd.f32 %v80, %v103
    %105 = vdwg.mxu0
    %v106 = vmax.f32 %v104, 0.0
    %v107 = vld [vmem:[#allocation7] sm:$0xff]
    %v108 = vld [vmem:[#allocation7 + $0x8] sm:$0xff]
    %v109 = vld [vmem:[#allocation7 + $0x10] sm:$0xff]
    %v110 = vld [vmem:[#allocation7 + $0x18] sm:$0xff]
    %v111 = vld [vmem:[%s4] sm:$0x1]
    %v113 = vperm.slane %v111, 0
    %v116 = vsel %vm82, %v106, 0
    %118 = vmatpush.msra.mxu0 0.0
    %119 = vmatpush.msra.mxu0 0.0
    %120 = vmatpush.msra.mxu0 0.0
    %121 = vmatpush.msra.mxu0 0.0
    %122 = vmatpush.msra.mxu0 0.0
    %123 = vmatpush.msra.mxu0 0.0
    %124 = vmatpush.msra.mxu0 0.0
    %125 = vmatpush.msra.mxu0 0.0
    %126 = vmatpush.msra.mxu0 0.0
    %127 = vmatpush.msra.mxu0 0.0
    %128 = vmatpush.msra.mxu0 0.0
    %129 = vmatpush.msra.mxu0 0.0
    %130 = vmatpush.msra.mxu0 %v110
    %131 = vmatpush.msra.mxu0 %v109
    %132 = vmatpush.msra.mxu0 %v108
    %133 = vmatpush.msra.mxu0 %v107
    %134 = vmatmul.f32.gmra.mxu0 %v116
    %v135 = vpop.f32.mrf.mxu0
    %v136 = vadd.f32 %v113, %v135
    %137 = vdwg.mxu0
    %v138 = vmax.f32 %v136, 0.0
    %v139 = vld [vmem:[%s5] sm:$0xff]
    %v140 = vld [vmem:[%s5 + $0x8] sm:$0xff]
    %v141 = vld [vmem:[%s5 + $0x10] sm:$0xff]
    %v142 = vld [vmem:[%s5 + $0x18] sm:$0xff]
    %v143 = vld [vmem:[#allocation2] sm:$0x1]
    %v145 = vperm.slane %v143, 0
    %v148 = vsel %vm82, %v138, 0
    %150 = vmatpush.msra.mxu0 0.0
    %151 = vmatpush.msra.mxu0 0.0
    %152 = vmatpush.msra.mxu0 0.0
    %153 = vmatpush.msra.mxu0 0.0
    %154 = vmatpush.msra.mxu0 0.0
    %155 = vmatpush.msra.mxu0 0.0
    %156 = vmatpush.msra.mxu0 0.0
    %157 = vmatpush.msra.mxu0 0.0
    %158 = vmatpush.msra.mxu0 0.0
    %159 = vmatpush.msra.mxu0 0.0
    %160 = vmatpush.msra.mxu0 0.0
    %161 = vmatpush.msra.mxu0 0.0
    %162 = vmatpush.msra.mxu0 %v142
    %163 = vmatpush.msra.mxu0 %v141
    %164 = vmatpush.msra.mxu0 %v140
    %165 = vmatpush.msra.mxu0 %v139
    %166 = vmatmul.f32.gmra.mxu0 %v148
    %v167 = vpop.f32.mrf.mxu0
    %v168 = vadd.f32 %v145, %v167
    %169 = vdwg.mxu0
    %vm170 = vcmask 1024
    %171 = vst.msk [vmem:[%s7] sm:$0x3] %vm170, %v168
    // Predicated region
    $region42: #{_lambda_.3} parent=1 // pred_check
      _
    $region43: #{_lambda_.3} parent=1 // pred_check_branch
      %173 = sbr.rel (0) target = $region45
    $region44: #{_lambda_.3} parent=1 // pred_region
      _
    $region45: #{_lambda_.3} parent=1 // pred_fallthru
      _
    // Predicated region
    $region46: #{_lambda_.3} parent=1 // pred_check
      _
    $region47: #{_lambda_.3} parent=1 // pred_check_branch
      %175 = sbr.rel (0) target = $region49
    $region48: #{_lambda_.3} parent=1 // pred_region
      _
    $region49: #{_lambda_.3} parent=1 // pred_fallthru
      _
    %176 = vsyncpa [#allocation4], 1
    %177 = vsyncpa [#allocation6], 1

// kernel: _lambda_.2
$region0: #{_lambda_.2}
  #allocation0 [shape = 'u32[]', space=smem, size = 0x4, offset = 0x4, fixed_abs, tag = 'smem constant byte address 0x4 - core index']
  #allocation1 [shape = 'u32[72,128]{1,0:T(1,128)}', space=vmem, size = 0x9000, scoped, tag = 'internal scratch']
  #allocation2 [shape = 'f32[32,16]{1,0:T(8,128)}', space=vmem, size = 0x4000, scoped, tag = 'scratch operand']
  #allocation3 [shape = 'f32[32,16]{1,0:T(8,128)}', space=vmem, size = 0x4000, scoped, tag = 'scratch operand']
  #allocation4 [shape = 'f32[16,24]{1,0:T(8,128)}', space=vmem, size = 0x2000, scoped, tag = 'scratch operand']
  #allocation5 [shape = 'f32[16,24]{1,0:T(8,128)}', space=vmem, size = 0x2000, scoped, tag = 'scratch operand']
  #allocation6 [shape = 'f32[8,32]{1,0:T(8,128)}', space=vmem, size = 0x1000, scoped, tag = 'scratch operand']
  #allocation7 [shape = 'f32[8,32]{1,0:T(8,128)}', space=vmem, size = 0x1000, scoped, tag = 'scratch operand']
  #allocation8 [shape = 'f32[8,22]{1,0:T(8,128)}', space=vmem, size = 0x1000, scoped, tag = 'scratch operand']
  #allocation9 [shape = 'f32[8,22]{1,0:T(8,128)}', space=vmem, size = 0x1000, scoped, tag = 'scratch operand']
  #allocation10 [shape = 'f32[8,13]{1,0:T(8,128)}', space=vmem, size = 0x1000, scoped, tag = 'scratch operand']
  #allocation11 [shape = 'f32[8,13]{1,0:T(8,128)}', space=vmem, size = 0x1000, scoped, tag = 'scratch operand']
  #allocation12 [shape = 'f32[8,4]{1,0:T(8,128)}', space=vmem, size = 0x1000, scoped, tag = 'scratch operand']
  %s0 = inlined_call_operand.vmem [shape: f32[2,64,8], index: 0, kind: input, shape index: {}]
  %s1 = inlined_call_operand.hbm [shape: f32[24,16], index: 1, kind: input, shape index: {}]
  %s2 = inlined_call_operand.hbm [shape: f32[48,16], index: 2, kind: input, shape index: {}]
  %s3 = inlined_call_operand.vmem [shape: f32[1,16], index: 3, kind: input, shape index: {}]
  %s4 = inlined_call_operand.vmem [shape: f32[1,16], index: 4, kind: input, shape index: {}]
  %s5 = inlined_call_operand.hbm [shape: f32[48,24], index: 5, kind: input, shape index: {}]
  %s6 = inlined_call_operand.vmem [shape: f32[72,24], index: 6, kind: input, shape index: {}]
  %s7 = inlined_call_operand.vmem [shape: f32[1,24], index: 7, kind: input, shape index: {}]
  %s8 = inlined_call_operand.vmem [shape: f32[1,24], index: 8, kind: input, shape index: {}]
  %s9 = inlined_call_operand.hbm [shape: f32[72,32], index: 9, kind: input, shape index: {}]
  %s10 = inlined_call_operand.vmem [shape: f32[96,32], index: 10, kind: input, shape index: {}]
  %s11 = inlined_call_operand.vmem [shape: f32[1,32], index: 11, kind: input, shape index: {}]
  %s12 = inlined_call_operand.vmem [shape: f32[1,32], index: 12, kind: input, shape index: {}]
  %s13 = inlined_call_operand.hbm [shape: f32[96,22], index: 13, kind: input, shape index: {}]
  %s14 = inlined_call_operand.hbm [shape: f32[66,22], index: 14, kind: input, shape index: {}]
  %s15 = inlined_call_operand.vmem [shape: f32[1,22], index: 15, kind: input, shape index: {}]
  %s16 = inlined_call_operand.vmem [shape: f32[1,22], index: 16, kind: input, shape index: {}]
  %s17 = inlined_call_operand.hbm [shape: f32[66,13], index: 17, kind: input, shape index: {}]
  %s18 = inlined_call_operand.hbm [shape: f32[39,13], index: 18, kind: input, shape index: {}]
  %s19 = inlined_call_operand.vmem [shape: f32[1,13], index: 19, kind: input, shape index: {}]
  %s20 = inlined_call_operand.vmem [shape: f32[1,13], index: 20, kind: input, shape index: {}]
  %s21 = inlined_call_operand.hbm [shape: f32[39,4], index: 21, kind: input, shape index: {}]
  %s22 = inlined_call_operand.hbm [shape: f32[12,4], index: 22, kind: input, shape index: {}]
  %s23 = inlined_call_operand.vmem [shape: f32[1,4], index: 23, kind: input, shape index: {}]
  %s24 = inlined_call_operand.vmem [shape: f32[1,4], index: 24, kind: input, shape index: {}]
  %s25 = inlined_call_operand.vmem [shape: f32[2,8,4], index: 25, kind: output, shape index: {}]
  %s26 = sld [smem:[#allocation0]]
  $region173: #{_lambda_.2} parent=0
    _
  %s28 = ssub.s32 1, %s26
  %s29 = scalar_select 0, %s28, %s26
  $region1: #{_lambda_.2} parent=0
    #allocation13 [shape = 'u8[12288]{0}', space=vmem, size = 0x3000, scoped, tag = 'input window, operand 1, single buffered']
    #allocation14 [shape = 's32[2]{0}', space=sflag, size = 0x8, scoped, tag = 'scoped memory for _lambda_.2']
    #allocation15 [shape = 'u8[24576]{0}', space=vmem, size = 0x6000, scoped, tag = 'input window, operand 2, single buffered']
    #allocation16 [shape = 's32[1]{0}', space=sflag, size = 0x4, scoped, tag = 'scoped memory for _lambda_.2']
    #allocation17 [shape = 'u8[24576]{0}', space=vmem, size = 0x6000, scoped, tag = 'input window, operand 5, single buffered']
    #allocation18 [shape = 'u8[36864]{0}', space=vmem, size = 0x9000, scoped, tag = 'input window, operand 9, single buffered']
    #allocation19 [shape = 's32[1]{0}', space=sflag, size = 0x4, scoped, tag = 'scoped memory for _lambda_.2']
    #allocation20 [shape = 'u8[49152]{0}', space=vmem, size = 0xc000, scoped, tag = 'input window, operand 13, single buffered']
    #allocation21 [shape = 'u8[36864]{0}', space=vmem, size = 0x9000, scoped, tag = 'input window, operand 14, single buffered']
    #allocation22 [shape = 's32[1]{0}', space=sflag, size = 0x4, scoped, tag = 'scoped memory for _lambda_.2']
    #allocation23 [shape = 'u8[36864]{0}', space=vmem, size = 0x9000, scoped, tag = 'input window, operand 17, single buffered']
    #allocation24 [shape = 'u8[20480]{0}', space=vmem, size = 0x5000, scoped, tag = 'input window, operand 18, single buffered']
    #allocation25 [shape = 's32[1]{0}', space=sflag, size = 0x4, scoped, tag = 'scoped memory for _lambda_.2']
    #allocation26 [shape = 'u8[20480]{0}', space=vmem, size = 0x5000, scoped, tag = 'input window, operand 21, single buffered']
    #allocation27 [shape = 'u8[8192]{0}', space=vmem, size = 0x2000, scoped, tag = 'input window, operand 22, single buffered']
    #allocation28 [shape = 's32[1]{0}', space=sflag, size = 0x4, scoped, tag = 'scoped memory for _lambda_.2']
    %30 = vsyncpa [#allocation14], 0
    %31 = vsyncpa [#allocation16], 0
    %32 = vsyncpa [#allocation19], 0
    %33 = vsyncpa [#allocation22], 0
    %34 = vsyncpa [#allocation25], 0
    %35 = vsyncpa [#allocation28], 0
    loop: start=0, step=1, limit=4
    $region2: #{_lambda_.2} parent=1 // loop_pre_header
      _
    $region3: #{_lambda_.2} parent=1 // loop_header
      %s37 = sphi 0, %s41
      %p38 = scmp.ge.s32.totalorder %s37, 4
      %s47 = sphi 0, %s49
      %s50 = sphi 0, %s47
      %s51 = sphi 0, %s50
      %s67 = sphi 0, %s51
      %s71 = sphi 0, %s71
      %s73 = sphi 0, %s71
      %s74 = sphi 0, %s73
      %s88 = sphi 0, %s74
      %s92 = sphi 0, %s92
      %s94 = sphi 0, %s92
      %s95 = sphi 0, %s94
      %s109 = sphi 0, %s95
      %s113 = sphi 0, %s113
      %s115 = sphi 0, %s113
      %s116 = sphi 0, %s115
      %s130 = sphi 0, %s116
      %s134 = sphi 0, %s134
      %s136 = sphi 0, %s134
      %s137 = sphi 0, %s136
      %s151 = sphi 0, %s137
      %s155 = sphi 0, %s155
      %s157 = sphi 0, %s155
      %s158 = sphi 0, %s157
      %s172 = sphi 0, %s158
      %s176 = sphi 0, %s176
      %s178 = sphi 0, %s176
      %s179 = sphi 0, %s178
      %s193 = sphi 0, %s179
      %s197 = sphi 0, %s197
      %s199 = sphi 0, %s197
      %s200 = sphi 0, %s199
      %s214 = sphi 0, %s200
      %s218 = sphi 0, %s218
      %s220 = sphi 0, %s218
      %s221 = sphi 0, %s220
      %s235 = sphi 0, %s221
      %s239 = sphi 0, %s239
      %s241 = sphi 0, %s239
      %s242 = sphi 0, %s241
      %s256 = sphi 0, %s242
      %s260 = sphi 0, %s260
      %s262 = sphi 0, %s260
      %s263 = sphi 0, %s262
      %s277 = sphi 0, %s263
      %s281 = sphi 0, %s281
      %s283 = sphi 0, %s281
      %s284 = sphi 0, %s283
      %s298 = sphi 0, %s284
      %s302 = sphi 0, %s302
      %s304 = sphi 0, %s302
      %s305 = sphi 0, %s304
      %s319 = sphi 0, %s305
      %s323 = sphi 0, %s323
      %s325 = sphi 0, %s323
      %s326 = sphi 0, %s325
      %s340 = sphi 0, %s326
      %s344 = sphi 0, %s344
      %s346 = sphi 0, %s344
      %s347 = sphi 0, %s346
      %s361 = sphi 0, %s347
      %s365 = sphi 0, %s365
      %s367 = sphi 0, %s365
      %s368 = sphi 0, %s367
      %s382 = sphi 0, %s368
      %s386 = sphi 0, %s386
      %s388 = sphi 0, %s386
      %s389 = sphi 0, %s388
      %s403 = sphi 0, %s389
      %s407 = sphi 0, %s407
      %s409 = sphi 0, %s407
      %s410 = sphi 0, %s409
      %s424 = sphi 0, %s410
      %s428 = sphi 0, %s428
      %s430 = sphi 0, %s428
      %s431 = sphi 0, %s430
      %s445 = sphi 0, %s431
      %s449 = sphi 0, %s449
      %s451 = sphi 0, %s449
      %s452 = sphi 0, %s451
      %s466 = sphi 0, %s452
      %s470 = sphi 0, %s470
      %s472 = sphi 0, %s470
      %s473 = sphi 0, %s472
      %s487 = sphi 0, %s473
      %s491 = sphi 0, %s491
      %s493 = sphi 0, %s491
      %s494 = sphi 0, %s493
      %s508 = sphi 0, %s494
      %s512 = sphi 0, %s512
      %s514 = sphi 0, %s512
      %s515 = sphi 0, %s514
      %s529 = sphi 0, %s515
      %s533 = sphi 0, %s533
      %s535 = sphi 0, %s533
      %s536 = sphi 0, %s535
      %s550 = sphi 0, %s536
      %s554 = sphi 0, %s554
      %s556 = sphi 0, %s554
      %s557 = sphi 0, %s556
      %s571 = sphi 0, %s557
      %s577 = sphi 0, %s579
      %s580 = sphi 0, %s577
      %s581 = sphi 0, %s580
      %s597 = sphi 0, %s581
    $region4: #{_lambda_.2} parent=1 // loop_header_branch
      %40 = sbr.rel (%p38) target = $region8
    $region5: #{_lambda_.2} parent=1 // loop_body
      %s42 = ssub.s32 %s37, 1
      %s43 = ssub.s32 %s37, 2
      %s44 = sadd.s32 %s37, 1
      %s45 = ssub.s32 %s37, %s44
      %p46 = scmp.eq.s32.totalorder %s45, 0
      %s48 = sadd.s32 %s47, 1
      %s49 = scalar_select %p46, %s47, %s48
      %p52 = pneg %p46
      %p53 = scmp.eq.s32.totalorder %s37, 1
      %p54 = por %p52, %p53
      %p55 = scmp.ne.s32.totalorder %s47, %s50
      %p56 = scmp.eq.s32.totalorder %s37, 0
      %p57 = por %p55, %p56
      %p58 = scmp.ne.s32.totalorder %s47, %s50
      %p59 = scmp.eq.s32.totalorder %s42, 1
      %p60 = por %p58, %p59
      %p61 = scmp.ne.s32.totalorder %s50, %s51
      %p62 = scmp.eq.s32.totalorder %s42, 0
      %p63 = por %p61, %p62
      %p64 = scmp.ne.s32.totalorder %s50, %s51
      %p65 = scmp.eq.s32.totalorder %s43, 1
      %p66 = por %p64, %p65
      %p68 = scmp.ne.s32.totalorder %s51, %s67
      %p69 = scmp.eq.s32.totalorder %s43, 0
      %p70 = por %p68, %p69
      %s72 = sadd.s32 %s71, 1
      %p75 = scmp.eq.s32.totalorder %s37, 1
      %p76 = scmp.ne.s32.totalorder %s71, %s73
      %p77 = scmp.eq.s32.totalorder %s37, 0
      %p78 = por %p76, %p77
      %p79 = scmp.ne.s32.totalorder %s71, %s73
      %p80 = scmp.eq.s32.totalorder %s42, 1
      %p81 = por %p79, %p80
      %p82 = scmp.ne.s32.totalorder %s73, %s74
      %p83 = scmp.eq.s32.totalorder %s42, 0
      %p84 = por %p82, %p83
      %p85 = scmp.ne.s32.totalorder %s73, %s74
      %p86 = scmp.eq.s32.totalorder %s43, 1
      %p87 = por %p85, %p86
      %p89 = scmp.ne.s32.totalorder %s74, %s88
      %p90 = scmp.eq.s32.totalorder %s43, 0
      %p91 = por %p89, %p90
      %s93 = sadd.s32 %s92, 1
      %p96 = scmp.eq.s32.totalorder %s37, 1
      %p97 = scmp.ne.s32.totalorder %s92, %s94
      %p98 = scmp.eq.s32.totalorder %s37, 0
      %p99 = por %p97, %p98
      %p100 = scmp.ne.s32.totalorder %s92, %s94
      %p101 = scmp.eq.s32.totalorder %s42, 1
      %p102 = por %p100, %p101
      %p103 = scmp.ne.s32.totalorder %s94, %s95
      %p104 = scmp.eq.s32.totalorder %s42, 0
      %p105 = por %p103, %p104
      %p106 = scmp.ne.s32.totalorder %s94, %s95
      %p107 = scmp.eq.s32.totalorder %s43, 1
      %p108 = por %p106, %p107
      %p110 = scmp.ne.s32.totalorder %s95, %s109
      %p111 = scmp.eq.s32.totalorder %s43, 0
      %p112 = por %p110, %p111
      %s114 = sadd.s32 %s113, 1
      %p117 = scmp.eq.s32.totalorder %s37, 1
      %p118 = scmp.ne.s32.totalorder %s113, %s115
      %p119 = scmp.eq.s32.totalorder %s37, 0
      %p120 = por %p118, %p119
      %p121 = scmp.ne.s32.totalorder %s113, %s115
      %p122 = scmp.eq.s32.totalorder %s42, 1
      %p123 = por %p121, %p122
      %p124 = scmp.ne.s32.totalorder %s115, %s116
      %p125 = scmp.eq.s32.totalorder %s42, 0
      %p126 = por %p124, %p125
      %p127 = scmp.ne.s32.totalorder %s115, %s116
      %p128 = scmp.eq.s32.totalorder %s43, 1
      %p129 = por %p127, %p128
      %p131 = scmp.ne.s32.totalorder %s116, %s130
      %p132 = scmp.eq.s32.totalorder %s43, 0
      %p133 = por %p131, %p132
      %s135 = sadd.s32 %s134, 1
      %p138 = scmp.eq.s32.totalorder %s37, 1
      %p139 = scmp.ne.s32.totalorder %s134, %s136
      %p140 = scmp.eq.s32.totalorder %s37, 0
      %p141 = por %p139, %p140
      %p142 = scmp.ne.s32.totalorder %s134, %s136
      %p143 = scmp.eq.s32.totalorder %s42, 1
      %p144 = por %p142, %p143
      %p145 = scmp.ne.s32.totalorder %s136, %s137
      %p146 = scmp.eq.s32.totalorder %s42, 0
      %p147 = por %p145, %p146
      %p148 = scmp.ne.s32.totalorder %s136, %s137
      %p149 = scmp.eq.s32.totalorder %s43, 1
      %p150 = por %p148, %p149
      %p152 = scmp.ne.s32.totalorder %s137, %s151
      %p153 = scmp.eq.s32.totalorder %s43, 0
      %p154 = por %p152, %p153
      %s156 = sadd.s32 %s155, 1
      %p159 = scmp.eq.s32.totalorder %s37, 1
      %p160 = scmp.ne.s32.totalorder %s155, %s157
      %p161 = scmp.eq.s32.totalorder %s37, 0
      %p162 = por %p160, %p161
      %p163 = scmp.ne.s32.totalorder %s155, %s157
      %p164 = scmp.eq.s32.totalorder %s42, 1
      %p165 = por %p163, %p164
      %p166 = scmp.ne.s32.totalorder %s157, %s158
      %p167 = scmp.eq.s32.totalorder %s42, 0
      %p168 = por %p166, %p167
      %p169 = scmp.ne.s32.totalorder %s157, %s158
      %p170 = scmp.eq.s32.totalorder %s43, 1
      %p171 = por %p169, %p170
      %p173 = scmp.ne.s32.totalorder %s158, %s172
      %p174 = scmp.eq.s32.totalorder %s43, 0
      %p175 = por %p173, %p174
      %s177 = sadd.s32 %s176, 1
      %p180 = scmp.eq.s32.totalorder %s37, 1
      %p181 = scmp.ne.s32.totalorder %s176, %s178
      %p182 = scmp.eq.s32.totalorder %s37, 0
      %p183 = por %p181, %p182
      %p184 = scmp.ne.s32.totalorder %s176, %s178
      %p185 = scmp.eq.s32.totalorder %s42, 1
      %p186 = por %p184, %p185
      %p187 = scmp.ne.s32.totalorder %s178, %s179
      %p188 = scmp.eq.s32.totalorder %s42, 0
      %p189 = por %p187, %p188
      %p190 = scmp.ne.s32.totalorder %s178, %s179
      %p191 = scmp.eq.s32.totalorder %s43, 1
      %p192 = por %p190, %p191
      %p194 = scmp.ne.s32.totalorder %s179, %s193
      %p195 = scmp.eq.s32.totalorder %s43, 0
      %p196 = por %p194, %p195
      %s198 = sadd.s32 %s197, 1
      %p201 = scmp.eq.s32.totalorder %s37, 1
      %p202 = scmp.ne.s32.totalorder %s197, %s199
      %p203 = scmp.eq.s32.totalorder %s37, 0
      %p204 = por %p202, %p203
      %p205 = scmp.ne.s32.totalorder %s197, %s199
      %p206 = scmp.eq.s32.totalorder %s42, 1
      %p207 = por %p205, %p206
      %p208 = scmp.ne.s32.totalorder %s199, %s200
      %p209 = scmp.eq.s32.totalorder %s42, 0
      %p210 = por %p208, %p209
      %p211 = scmp.ne.s32.totalorder %s199, %s200
      %p212 = scmp.eq.s32.totalorder %s43, 1
      %p213 = por %p211, %p212
      %p215 = scmp.ne.s32.totalorder %s200, %s214
      %p216 = scmp.eq.s32.totalorder %s43, 0
      %p217 = por %p215, %p216
      %s219 = sadd.s32 %s218, 1
      %p222 = scmp.eq.s32.totalorder %s37, 1
      %p223 = scmp.ne.s32.totalorder %s218, %s220
      %p224 = scmp.eq.s32.totalorder %s37, 0
      %p225 = por %p223, %p224
      %p226 = scmp.ne.s32.totalorder %s218, %s220
      %p227 = scmp.eq.s32.totalorder %s42, 1
      %p228 = por %p226, %p227
      %p229 = scmp.ne.s32.totalorder %s220, %s221
      %p230 = scmp.eq.s32.totalorder %s42, 0
      %p231 = por %p229, %p230
      %p232 = scmp.ne.s32.totalorder %s220, %s221
      %p233 = scmp.eq.s32.totalorder %s43, 1
      %p234 = por %p232, %p233
      %p236 = scmp.ne.s32.totalorder %s221, %s235
      %p237 = scmp.eq.s32.totalorder %s43, 0
      %p238 = por %p236, %p237
      %s240 = sadd.s32 %s239, 1
      %p243 = scmp.eq.s32.totalorder %s37, 1
      %p244 = scmp.ne.s32.totalorder %s239, %s241
      %p245 = scmp.eq.s32.totalorder %s37, 0
      %p246 = por %p244, %p245
      %p247 = scmp.ne.s32.totalorder %s239, %s241
      %p248 = scmp.eq.s32.totalorder %s42, 1
      %p249 = por %p247, %p248
      %p250 = scmp.ne.s32.totalorder %s241, %s242
      %p251 = scmp.eq.s32.totalorder %s42, 0
      %p252 = por %p250, %p251
      %p253 = scmp.ne.s32.totalorder %s241, %s242
      %p254 = scmp.eq.s32.totalorder %s43, 1
      %p255 = por %p253, %p254
      %p257 = scmp.ne.s32.totalorder %s242, %s256
      %p258 = scmp.eq.s32.totalorder %s43, 0
      %p259 = por %p257, %p258
      %s261 = sadd.s32 %s260, 1
      %p264 = scmp.eq.s32.totalorder %s37, 1
      %p265 = scmp.ne.s32.totalorder %s260, %s262
      %p266 = scmp.eq.s32.totalorder %s37, 0
      %p267 = por %p265, %p266
      %p268 = scmp.ne.s32.totalorder %s260, %s262
      %p269 = scmp.eq.s32.totalorder %s42, 1
      %p270 = por %p268, %p269
      %p271 = scmp.ne.s32.totalorder %s262, %s263
      %p272 = scmp.eq.s32.totalorder %s42, 0
      %p273 = por %p271, %p272
      %p274 = scmp.ne.s32.totalorder %s262, %s263
      %p275 = scmp.eq.s32.totalorder %s43, 1
      %p276 = por %p274, %p275
      %p278 = scmp.ne.s32.totalorder %s263, %s277
      %p279 = scmp.eq.s32.totalorder %s43, 0
      %p280 = por %p278, %p279
      %s282 = sadd.s32 %s281, 1
      %p285 = scmp.eq.s32.totalorder %s37, 1
      %p286 = scmp.ne.s32.totalorder %s281, %s283
      %p287 = scmp.eq.s32.totalorder %s37, 0
      %p288 = por %p286, %p287
      %p289 = scmp.ne.s32.totalorder %s281, %s283
      %p290 = scmp.eq.s32.totalorder %s42, 1
      %p291 = por %p289, %p290
      %p292 = scmp.ne.s32.totalorder %s283, %s284
      %p293 = scmp.eq.s32.totalorder %s42, 0
      %p294 = por %p292, %p293
      %p295 = scmp.ne.s32.totalorder %s283, %s284
      %p296 = scmp.eq.s32.totalorder %s43, 1
      %p297 = por %p295, %p296
      %p299 = scmp.ne.s32.totalorder %s284, %s298
      %p300 = scmp.eq.s32.totalorder %s43, 0
      %p301 = por %p299, %p300
      %s303 = sadd.s32 %s302, 1
      %p306 = scmp.eq.s32.totalorder %s37, 1
      %p307 = scmp.ne.s32.totalorder %s302, %s304
      %p308 = scmp.eq.s32.totalorder %s37, 0
      %p309 = por %p307, %p308
      %p310 = scmp.ne.s32.totalorder %s302, %s304
      %p311 = scmp.eq.s32.totalorder %s42, 1
      %p312 = por %p310, %p311
      %p313 = scmp.ne.s32.totalorder %s304, %s305
      %p314 = scmp.eq.s32.totalorder %s42, 0
      %p315 = por %p313, %p314
      %p316 = scmp.ne.s32.totalorder %s304, %s305
      %p317 = scmp.eq.s32.totalorder %s43, 1
      %p318 = por %p316, %p317
      %p320 = scmp.ne.s32.totalorder %s305, %s319
      %p321 = scmp.eq.s32.totalorder %s43, 0
      %p322 = por %p320, %p321
      %s324 = sadd.s32 %s323, 1
      %p327 = scmp.eq.s32.totalorder %s37, 1
      %p328 = scmp.ne.s32.totalorder %s323, %s325
      %p329 = scmp.eq.s32.totalorder %s37, 0
      %p330 = por %p328, %p329
      %p331 = scmp.ne.s32.totalorder %s323, %s325
      %p332 = scmp.eq.s32.totalorder %s42, 1
      %p333 = por %p331, %p332
      %p334 = scmp.ne.s32.totalorder %s325, %s326
      %p335 = scmp.eq.s32.totalorder %s42, 0
      %p336 = por %p334, %p335
      %p337 = scmp.ne.s32.totalorder %s325, %s326
      %p338 = scmp.eq.s32.totalorder %s43, 1
      %p339 = por %p337, %p338
      %p341 = scmp.ne.s32.totalorder %s326, %s340
      %p342 = scmp.eq.s32.totalorder %s43, 0
      %p343 = por %p341, %p342
      %s345 = sadd.s32 %s344, 1
      %p348 = scmp.eq.s32.totalorder %s37, 1
      %p349 = scmp.ne.s32.totalorder %s344, %s346
      %p350 = scmp.eq.s32.totalorder %s37, 0
      %p351 = por %p349, %p350
      %p352 = scmp.ne.s32.totalorder %s344, %s346
      %p353 = scmp.eq.s32.totalorder %s42, 1
      %p354 = por %p352, %p353
      %p355 = scmp.ne.s32.totalorder %s346, %s347
      %p356 = scmp.eq.s32.totalorder %s42, 0
      %p357 = por %p355, %p356
      %p358 = scmp.ne.s32.totalorder %s346, %s347
      %p359 = scmp.eq.s32.totalorder %s43, 1
      %p360 = por %p358, %p359
      %p362 = scmp.ne.s32.totalorder %s347, %s361
      %p363 = scmp.eq.s32.totalorder %s43, 0
      %p364 = por %p362, %p363
      %s366 = sadd.s32 %s365, 1
      %p369 = scmp.eq.s32.totalorder %s37, 1
      %p370 = scmp.ne.s32.totalorder %s365, %s367
      %p371 = scmp.eq.s32.totalorder %s37, 0
      %p372 = por %p370, %p371
      %p373 = scmp.ne.s32.totalorder %s365, %s367
      %p374 = scmp.eq.s32.totalorder %s42, 1
      %p375 = por %p373, %p374
      %p376 = scmp.ne.s32.totalorder %s367, %s368
      %p377 = scmp.eq.s32.totalorder %s42, 0
      %p378 = por %p376, %p377
      %p379 = scmp.ne.s32.totalorder %s367, %s368
      %p380 = scmp.eq.s32.totalorder %s43, 1
      %p381 = por %p379, %p380
      %p383 = scmp.ne.s32.totalorder %s368, %s382
      %p384 = scmp.eq.s32.totalorder %s43, 0
      %p385 = por %p383, %p384
      %s387 = sadd.s32 %s386, 1
      %p390 = scmp.eq.s32.totalorder %s37, 1
      %p391 = scmp.ne.s32.totalorder %s386, %s388
      %p392 = scmp.eq.s32.totalorder %s37, 0
      %p393 = por %p391, %p392
      %p394 = scmp.ne.s32.totalorder %s386, %s388
      %p395 = scmp.eq.s32.totalorder %s42, 1
      %p396 = por %p394, %p395
      %p397 = scmp.ne.s32.totalorder %s388, %s389
      %p398 = scmp.eq.s32.totalorder %s42, 0
      %p399 = por %p397, %p398
      %p400 = scmp.ne.s32.totalorder %s388, %s389
      %p401 = scmp.eq.s32.totalorder %s43, 1
      %p402 = por %p400, %p401
      %p404 = scmp.ne.s32.totalorder %s389, %s403
      %p405 = scmp.eq.s32.totalorder %s43, 0
      %p406 = por %p404, %p405
      %s408 = sadd.s32 %s407, 1
      %p411 = scmp.eq.s32.totalorder %s37, 1
      %p412 = scmp.ne.s32.totalorder %s407, %s409
      %p413 = scmp.eq.s32.totalorder %s37, 0
      %p414 = por %p412, %p413
      %p415 = scmp.ne.s32.totalorder %s407, %s409
      %p416 = scmp.eq.s32.totalorder %s42, 1
      %p417 = por %p415, %p416
      %p418 = scmp.ne.s32.totalorder %s409, %s410
      %p419 = scmp.eq.s32.totalorder %s42, 0
      %p420 = por %p418, %p419
      %p421 = scmp.ne.s32.totalorder %s409, %s410
      %p422 = scmp.eq.s32.totalorder %s43, 1
      %p423 = por %p421, %p422
      %p425 = scmp.ne.s32.totalorder %s410, %s424
      %p426 = scmp.eq.s32.totalorder %s43, 0
      %p427 = por %p425, %p426
      %s429 = sadd.s32 %s428, 1
      %p432 = scmp.eq.s32.totalorder %s37, 1
      %p433 = scmp.ne.s32.totalorder %s428, %s430
      %p434 = scmp.eq.s32.totalorder %s37, 0
      %p435 = por %p433, %p434
      %p436 = scmp.ne.s32.totalorder %s428, %s430
      %p437 = scmp.eq.s32.totalorder %s42, 1
      %p438 = por %p436, %p437
      %p439 = scmp.ne.s32.totalorder %s430, %s431
      %p440 = scmp.eq.s32.totalorder %s42, 0
      %p441 = por %p439, %p440
      %p442 = scmp.ne.s32.totalorder %s430, %s431
      %p443 = scmp.eq.s32.totalorder %s43, 1
      %p444 = por %p442, %p443
      %p446 = scmp.ne.s32.totalorder %s431, %s445
      %p447 = scmp.eq.s32.totalorder %s43, 0
      %p448 = por %p446, %p447
      %s450 = sadd.s32 %s449, 1
      %p453 = scmp.eq.s32.totalorder %s37, 1
      %p454 = scmp.ne.s32.totalorder %s449, %s451
      %p455 = scmp.eq.s32.totalorder %s37, 0
      %p456 = por %p454, %p455
      %p457 = scmp.ne.s32.totalorder %s449, %s451
      %p458 = scmp.eq.s32.totalorder %s42, 1
      %p459 = por %p457, %p458
      %p460 = scmp.ne.s32.totalorder %s451, %s452
      %p461 = scmp.eq.s32.totalorder %s42, 0
      %p462 = por %p460, %p461
      %p463 = scmp.ne.s32.totalorder %s451, %s452
      %p464 = scmp.eq.s32.totalorder %s43, 1
      %p465 = por %p463, %p464
      %p467 = scmp.ne.s32.totalorder %s452, %s466
      %p468 = scmp.eq.s32.totalorder %s43, 0
      %p469 = por %p467, %p468
      %s471 = sadd.s32 %s470, 1
      %p474 = scmp.eq.s32.totalorder %s37, 1
      %p475 = scmp.ne.s32.totalorder %s470, %s472
      %p476 = scmp.eq.s32.totalorder %s37, 0
      %p477 = por %p475, %p476
      %p478 = scmp.ne.s32.totalorder %s470, %s472
      %p479 = scmp.eq.s32.totalorder %s42, 1
      %p480 = por %p478, %p479
      %p481 = scmp.ne.s32.totalorder %s472, %s473
      %p482 = scmp.eq.s32.totalorder %s42, 0
      %p483 = por %p481, %p482
      %p484 = scmp.ne.s32.totalorder %s472, %s473
      %p485 = scmp.eq.s32.totalorder %s43, 1
      %p486 = por %p484, %p485
      %p488 = scmp.ne.s32.totalorder %s473, %s487
      %p489 = scmp.eq.s32.totalorder %s43, 0
      %p490 = por %p488, %p489
      %s492 = sadd.s32 %s491, 1
      %p495 = scmp.eq.s32.totalorder %s37, 1
      %p496 = scmp.ne.s32.totalorder %s491, %s493
      %p497 = scmp.eq.s32.totalorder %s37, 0
      %p498 = por %p496, %p497
      %p499 = scmp.ne.s32.totalorder %s491, %s493
      %p500 = scmp.eq.s32.totalorder %s42, 1
      %p501 = por %p499, %p500
      %p502 = scmp.ne.s32.totalorder %s493, %s494
      %p503 = scmp.eq.s32.totalorder %s42, 0
      %p504 = por %p502, %p503
      %p505 = scmp.ne.s32.totalorder %s493, %s494
      %p506 = scmp.eq.s32.totalorder %s43, 1
      %p507 = por %p505, %p506
      %p509 = scmp.ne.s32.totalorder %s494, %s508
      %p510 = scmp.eq.s32.totalorder %s43, 0
      %p511 = por %p509, %p510
      %s513 = sadd.s32 %s512, 1
      %p516 = scmp.eq.s32.totalorder %s37, 1
      %p517 = scmp.ne.s32.totalorder %s512, %s514
      %p518 = scmp.eq.s32.totalorder %s37, 0
      %p519 = por %p517, %p518
      %p520 = scmp.ne.s32.totalorder %s512, %s514
      %p521 = scmp.eq.s32.totalorder %s42, 1
      %p522 = por %p520, %p521
      %p523 = scmp.ne.s32.totalorder %s514, %s515
      %p524 = scmp.eq.s32.totalorder %s42, 0
      %p525 = por %p523, %p524
      %p526 = scmp.ne.s32.totalorder %s514, %s515
      %p527 = scmp.eq.s32.totalorder %s43, 1
      %p528 = por %p526, %p527
      %p530 = scmp.ne.s32.totalorder %s515, %s529
      %p531 = scmp.eq.s32.totalorder %s43, 0
      %p532 = por %p530, %p531
      %s534 = sadd.s32 %s533, 1
      %p537 = scmp.eq.s32.totalorder %s37, 1
      %p538 = scmp.ne.s32.totalorder %s533, %s535
      %p539 = scmp.eq.s32.totalorder %s37, 0
      %p540 = por %p538, %p539
      %p541 = scmp.ne.s32.totalorder %s533, %s535
      %p542 = scmp.eq.s32.totalorder %s42, 1
      %p543 = por %p541, %p542
      %p544 = scmp.ne.s32.totalorder %s535, %s536
      %p545 = scmp.eq.s32.totalorder %s42, 0
      %p546 = por %p544, %p545
      %p547 = scmp.ne.s32.totalorder %s535, %s536
      %p548 = scmp.eq.s32.totalorder %s43, 1
      %p549 = por %p547, %p548
      %p551 = scmp.ne.s32.totalorder %s536, %s550
      %p552 = scmp.eq.s32.totalorder %s43, 0
      %p553 = por %p551, %p552
      %s555 = sadd.s32 %s554, 1
      %p558 = scmp.eq.s32.totalorder %s37, 1
      %p559 = scmp.ne.s32.totalorder %s554, %s556
      %p560 = scmp.eq.s32.totalorder %s37, 0
      %p561 = por %p559, %p560
      %p562 = scmp.ne.s32.totalorder %s554, %s556
      %p563 = scmp.eq.s32.totalorder %s42, 1
      %p564 = por %p562, %p563
      %p565 = scmp.ne.s32.totalorder %s556, %s557
      %p566 = scmp.eq.s32.totalorder %s42, 0
      %p567 = por %p565, %p566
      %p568 = scmp.ne.s32.totalorder %s556, %s557
      %p569 = scmp.eq.s32.totalorder %s43, 1
      %p570 = por %p568, %p569
      %p572 = scmp.ne.s32.totalorder %s557, %s571
      %p573 = scmp.eq.s32.totalorder %s43, 0
      %p574 = por %p572, %p573
      %s575 = ssub.s32 %s37, %s44
      %p576 = scmp.eq.s32.totalorder %s575, 0
      %s578 = sadd.s32 %s577, 1
      %s579 = scalar_select %p576, %s577, %s578
      %p582 = pneg %p576
      %p583 = scmp.eq.s32.totalorder %s37, 1
      %p584 = por %p582, %p583
      %p585 = scmp.ne.s32.totalorder %s577, %s580
      %p586 = scmp.eq.s32.totalorder %s37, 0
      %p587 = por %p585, %p586
      %p588 = scmp.ne.s32.totalorder %s577, %s580
      %p589 = scmp.eq.s32.totalorder %s42, 1
      %p590 = por %p588, %p589
      %p591 = scmp.ne.s32.totalorder %s580, %s581
      %p592 = scmp.eq.s32.totalorder %s42, 0
      %p593 = por %p591, %p592
      %p594 = scmp.ne.s32.totalorder %s580, %s581
      %p595 = scmp.eq.s32.totalorder %s43, 1
      %p596 = por %p594, %p595
      %p598 = scmp.ne.s32.totalorder %s581, %s597
      %p599 = scmp.eq.s32.totalorder %s43, 0
      %p600 = por %p598, %p599
      %p601 = scmp.le.s32.totalorder 1, %s37
      %p602 = scmp.lt.s32.totalorder %s37, 3
      %p603 = pnand %p601, %p602
      %p604 = pneg %p603
      // Predicated region
      $region9: #{_lambda_.2} parent=5 // pred_check
        _
      $region10: #{_lambda_.2} parent=5 // pred_check_branch
        %606 = sbr.rel (%p603) target = $region12
      $region11: #{_lambda_.2} parent=5 // pred_region
        %s607 = ssub.s32 %s37, 1
        // Predicated region
        $region13: #{_lambda_.2} parent=11 // pred_check
          %p608 = pneg %p84
        $region14: #{_lambda_.2} parent=11 // pred_check_branch
          %610 = sbr.rel (%p608) target = $region16
        $region15: #{_lambda_.2} parent=11 // pred_region
          %612 = vsyncadd [#allocation14], 0
          %s613 = sshll.u32 %s1, 4
          %s614 = int_to_ptr.hbm [resolvable:$true] %s613
          %s615 = sshll.u32 [#allocation13], 4
          %s616 = int_to_ptr.vmem [resolvable:$true] %s615
          %621 = dma.hbm_to_vmem [thread:$0]  %s614, 384, %s616, [#allocation14], 128, 128, 8
        $region16: #{_lambda_.2} parent=11 // pred_fallthru
          _
        // Predicated region
        $region17: #{_lambda_.2} parent=11 // pred_check
          %p622 = pneg %p105
        $region18: #{_lambda_.2} parent=11 // pred_check_branch
          %624 = sbr.rel (%p622) target = $region20
        $region19: #{_lambda_.2} parent=11 // pred_region
          %626 = vsyncadd [#allocation16], 0
          %s627 = sshll.u32 %s2, 4
          %s628 = int_to_ptr.hbm [resolvable:$true] %s627
          %s629 = sshll.u32 [#allocation15], 4
          %s630 = int_to_ptr.vmem [resolvable:$true] %s629
          %635 = dma.hbm_to_vmem [thread:$0]  %s628, 768, %s630, [#allocation16], 128, 128, 8
        $region20: #{_lambda_.2} parent=11 // pred_fallthru
          _
        // Predicated region
        $region21: #{_lambda_.2} parent=11 // pred_check
          %p636 = pneg %p126
        $region22: #{_lambda_.2} parent=11 // pred_check_branch
          %638 = sbr.rel (%p636) target = $region24
        $region23: #{_lambda_.2} parent=11 // pred_region
          _
        $region24: #{_lambda_.2} parent=11 // pred_fallthru
          _
        // Predicated region
        $region25: #{_lambda_.2} parent=11 // pred_check
          %p639 = pneg %p147
        $region26: #{_lambda_.2} parent=11 // pred_check_branch
          %641 = sbr.rel (%p639) target = $region28
        $region27: #{_lambda_.2} parent=11 // pred_region
          _
        $region28: #{_lambda_.2} parent=11 // pred_fallthru
          _
        // Predicated region
        $region29: #{_lambda_.2} parent=11 // pred_check
          %p642 = pneg %p168
        $region30: #{_lambda_.2} parent=11 // pred_check_branch
          %644 = sbr.rel (%p642) target = $region32
        $region31: #{_lambda_.2} parent=11 // pred_region
          %646 = vsyncadd [#allocation16], 0
          %s647 = sshll.u32 %s5, 4
          %s648 = int_to_ptr.hbm [resolvable:$true] %s647
          %s649 = sshll.u32 [#allocation17], 4
          %s650 = int_to_ptr.vmem [resolvable:$true] %s649
          %655 = dma.hbm_to_vmem [thread:$0]  %s648, 768, %s650, [#allocation16], 128, 128, 8
        $region32: #{_lambda_.2} parent=11 // pred_fallthru
          _
        // Predicated region
        $region33: #{_lambda_.2} parent=11 // pred_check
          %p656 = pneg %p189
        $region34: #{_lambda_.2} parent=11 // pred_check_branch
          %658 = sbr.rel (%p656) target = $region36
        $region35: #{_lambda_.2} parent=11 // pred_region
          _
        $region36: #{_lambda_.2} parent=11 // pred_fallthru
          _
        // Predicated region
        $region37: #{_lambda_.2} parent=11 // pred_check
          %p659 = pneg %p210
        $region38: #{_lambda_.2} parent=11 // pred_check_branch
          %661 = sbr.rel (%p659) target = $region40
        $region39: #{_lambda_.2} parent=11 // pred_region
          _
        $region40: #{_lambda_.2} parent=11 // pred_fallthru
          _
        // Predicated region
        $region41: #{_lambda_.2} parent=11 // pred_check
          %p662 = pneg %p231
        $region42: #{_lambda_.2} parent=11 // pred_check_branch
          %664 = sbr.rel (%p662) target = $region44
        $region43: #{_lambda_.2} parent=11 // pred_region
          _
        $region44: #{_lambda_.2} parent=11 // pred_fallthru
          _
        // Predicated region
        $region45: #{_lambda_.2} parent=11 // pred_check
          %p665 = pneg %p252
        $region46: #{_lambda_.2} parent=11 // pred_check_branch
          %667 = sbr.rel (%p665) target = $region48
        $region47: #{_lambda_.2} parent=11 // pred_region
          %669 = vsyncadd [#allocation19], 0
          %s670 = sshll.u32 %s9, 4
          %s671 = int_to_ptr.hbm [resolvable:$true] %s670
          %s672 = sshll.u32 [#allocation18], 4
          %s673 = int_to_ptr.vmem [resolvable:$true] %s672
          %678 = dma.hbm_to_vmem [thread:$0]  %s671, 1152, %s673, [#allocation19], 128, 128, 8
        $region48: #{_lambda_.2} parent=11 // pred_fallthru
          _
        // Predicated region
        $region49: #{_lambda_.2} parent=11 // pred_check
          %p679 = pneg %p273
        $region50: #{_lambda_.2} parent=11 // pred_check_branch
          %681 = sbr.rel (%p679) target = $region52
        $region51: #{_lambda_.2} parent=11 // pred_region
          _
        $region52: #{_lambda_.2} parent=11 // pred_fallthru
          _
        // Predicated region
        $region53: #{_lambda_.2} parent=11 // pred_check
          %p682 = pneg %p294
        $region54: #{_lambda_.2} parent=11 // pred_check_branch
          %684 = sbr.rel (%p682) target = $region56
        $region55: #{_lambda_.2} parent=11 // pred_region
          _
        $region56: #{_lambda_.2} parent=11 // pred_fallthru
          _
        // Predicated region
        $region57: #{_lambda_.2} parent=11 // pred_check
          %p685 = pneg %p315
        $region58: #{_lambda_.2} parent=11 // pred_check_branch
          %687 = sbr.rel (%p685) target = $region60
        $region59: #{_lambda_.2} parent=11 // pred_region
          _
        $region60: #{_lambda_.2} parent=11 // pred_fallthru
          _
        // Predicated region
        $region61: #{_lambda_.2} parent=11 // pred_check
          %p688 = pneg %p336
        $region62: #{_lambda_.2} parent=11 // pred_check_branch
          %690 = sbr.rel (%p688) target = $region64
        $region63: #{_lambda_.2} parent=11 // pred_region
          %692 = vsyncadd [#allocation19], 0
          %s693 = sshll.u32 %s13, 4
          %s694 = int_to_ptr.hbm [resolvable:$true] %s693
          %s695 = sshll.u32 [#allocation20], 4
          %s696 = int_to_ptr.vmem [resolvable:$true] %s695
          %701 = dma.hbm_to_vmem [thread:$0]  %s694, 1536, %s696, [#allocation19], 128, 128, 8
        $region64: #{_lambda_.2} parent=11 // pred_fallthru
          _
        // Predicated region
        $region65: #{_lambda_.2} parent=11 // pred_check
          %p702 = pneg %p357
        $region66: #{_lambda_.2} parent=11 // pred_check_branch
          %704 = sbr.rel (%p702) target = $region68
        $region67: #{_lambda_.2} parent=11 // pred_region
          %706 = vsyncadd [#allocation22], 0
          %s707 = sshll.u32 %s14, 4
          %s708 = int_to_ptr.hbm [resolvable:$true] %s707
          %s709 = sshll.u32 [#allocation21], 4
          %s710 = int_to_ptr.vmem [resolvable:$true] %s709
          %715 = dma.hbm_to_vmem [thread:$0]  %s708, 1152, %s710, [#allocation22], 128, 128, 8
        $region68: #{_lambda_.2} parent=11 // pred_fallthru
          _
        // Predicated region
        $region69: #{_lambda_.2} parent=11 // pred_check
          %p716 = pneg %p378
        $region70: #{_lambda_.2} parent=11 // pred_check_branch
          %718 = sbr.rel (%p716) target = $region72
        $region71: #{_lambda_.2} parent=11 // pred_region
          _
        $region72: #{_lambda_.2} parent=11 // pred_fallthru
          _
        // Predicated region
        $region73: #{_lambda_.2} parent=11 // pred_check
          %p719 = pneg %p399
        $region74: #{_lambda_.2} parent=11 // pred_check_branch
          %721 = sbr.rel (%p719) target = $region76
        $region75: #{_lambda_.2} parent=11 // pred_region
          _
        $region76: #{_lambda_.2} parent=11 // pred_fallthru
          _
        // Predicated region
        $region77: #{_lambda_.2} parent=11 // pred_check
          %p722 = pneg %p420
        $region78: #{_lambda_.2} parent=11 // pred_check_branch
          %724 = sbr.rel (%p722) target = $region80
        $region79: #{_lambda_.2} parent=11 // pred_region
          %726 = vsyncadd [#allocation22], 0
          %s727 = sshll.u32 %s17, 4
          %s728 = int_to_ptr.hbm [resolvable:$true] %s727
          %s729 = sshll.u32 [#allocation23], 4
          %s730 = int_to_ptr.vmem [resolvable:$true] %s729
          %735 = dma.hbm_to_vmem [thread:$0]  %s728, 1152, %s730, [#allocation22], 128, 128, 8
        $region80: #{_lambda_.2} parent=11 // pred_fallthru
          _
        // Predicated region
        $region81: #{_lambda_.2} parent=11 // pred_check
          %p736 = pneg %p441
        $region82: #{_lambda_.2} parent=11 // pred_check_branch
          %738 = sbr.rel (%p736) target = $region84
        $region83: #{_lambda_.2} parent=11 // pred_region
          %740 = vsyncadd [#allocation25], 0
          %s741 = sshll.u32 %s18, 4
          %s742 = int_to_ptr.hbm [resolvable:$true] %s741
          %s743 = sshll.u32 [#allocation24], 4
          %s744 = int_to_ptr.vmem [resolvable:$true] %s743
          %749 = dma.hbm_to_vmem [thread:$0]  %s742, 640, %s744, [#allocation25], 128, 128, 8
        $region84: #{_lambda_.2} parent=11 // pred_fallthru
          _
        // Predicated region
        $region85: #{_lambda_.2} parent=11 // pred_check
          %p750 = pneg %p462
        $region86: #{_lambda_.2} parent=11 // pred_check_branch
          %752 = sbr.rel (%p750) target = $region88
        $region87: #{_lambda_.2} parent=11 // pred_region
          _
        $region88: #{_lambda_.2} parent=11 // pred_fallthru
          _
        // Predicated region
        $region89: #{_lambda_.2} parent=11 // pred_check
          %p753 = pneg %p483
        $region90: #{_lambda_.2} parent=11 // pred_check_branch
          %755 = sbr.rel (%p753) target = $region92
        $region91: #{_lambda_.2} parent=11 // pred_region
          _
        $region92: #{_lambda_.2} parent=11 // pred_fallthru
          _
        // Predicated region
        $region93: #{_lambda_.2} parent=11 // pred_check
          %p756 = pneg %p504
        $region94: #{_lambda_.2} parent=11 // pred_check_branch
          %758 = sbr.rel (%p756) target = $region96
        $region95: #{_lambda_.2} parent=11 // pred_region
          %760 = vsyncadd [#allocation25], 0
          %s761 = sshll.u32 %s21, 4
          %s762 = int_to_ptr.hbm [resolvable:$true] %s761
          %s763 = sshll.u32 [#allocation26], 4
          %s764 = int_to_ptr.vmem [resolvable:$true] %s763
          %769 = dma.hbm_to_vmem [thread:$0]  %s762, 640, %s764, [#allocation25], 128, 128, 8
        $region96: #{_lambda_.2} parent=11 // pred_fallthru
          _
        // Predicated region
        $region97: #{_lambda_.2} parent=11 // pred_check
          %p770 = pneg %p525
        $region98: #{_lambda_.2} parent=11 // pred_check_branch
          %772 = sbr.rel (%p770) target = $region100
        $region99: #{_lambda_.2} parent=11 // pred_region
          %774 = vsyncadd [#allocation28], 0
          %s775 = sshll.u32 %s22, 4
          %s776 = int_to_ptr.hbm [resolvable:$true] %s775
          %s777 = sshll.u32 [#allocation27], 4
          %s778 = int_to_ptr.vmem [resolvable:$true] %s777
          %783 = dma.hbm_to_vmem [thread:$0]  %s776, 256, %s778, [#allocation28], 128, 128, 8
        $region100: #{_lambda_.2} parent=11 // pred_fallthru
          _
        // Predicated region
        $region101: #{_lambda_.2} parent=11 // pred_check
          %p784 = pneg %p546
        $region102: #{_lambda_.2} parent=11 // pred_check_branch
          %786 = sbr.rel (%p784) target = $region104
        $region103: #{_lambda_.2} parent=11 // pred_region
          _
        $region104: #{_lambda_.2} parent=11 // pred_fallthru
          _
        // Predicated region
        $region105: #{_lambda_.2} parent=11 // pred_check
          %p787 = pneg %p567
        $region106: #{_lambda_.2} parent=11 // pred_check_branch
          %789 = sbr.rel (%p787) target = $region108
        $region107: #{_lambda_.2} parent=11 // pred_region
          _
        $region108: #{_lambda_.2} parent=11 // pred_fallthru
          _
      $region12: #{_lambda_.2} parent=5 // pred_fallthru
        _
      %p790 = scmp.lt.s32.totalorder %s37, 2
      // Predicated region
      $region109: #{_lambda_.2} parent=5 // pred_check
        %p791 = pneg %p790
      $region110: #{_lambda_.2} parent=5 // pred_check_branch
        %793 = sbr.rel (%p791) target = $region112
      $region111: #{_lambda_.2} parent=5 // pred_region
        // Predicated region
        $region113: #{_lambda_.2} parent=111 // pred_check
          %p794 = pneg %p57
        $region114: #{_lambda_.2} parent=111 // pred_check_branch
          %796 = sbr.rel (%p794) target = $region116
        $region115: #{_lambda_.2} parent=111 // pred_region
          %p797 = scmp.lt.s32.totalorder %s37, 1
          %s798 = scalar_select %p797, %s37, 1
          %s799 = smul.addr %s798, 8
          %s800 = smul.addr %s799, 8
          %s801 = scalar_lea.vmem %s0, %s800
        $region116: #{_lambda_.2} parent=111 // pred_fallthru
          _
      $region112: #{_lambda_.2} parent=5 // pred_fallthru
        _
      %p802 = scmp.le.s32.totalorder 1, %s37
      %p803 = scmp.lt.s32.totalorder %s37, 3
      %p804 = pnand %p802, %p803
      %p805 = pneg %p804
      // Predicated region
      $region117: #{_lambda_.2} parent=5 // pred_check
        _
      $region118: #{_lambda_.2} parent=5 // pred_check_branch
        %807 = sbr.rel (%p804) target = $region120
      $region119: #{_lambda_.2} parent=5 // pred_region
        %s808 = ssub.s32 %s37, 1
        // Predicated region
        $region121: #{_lambda_.2} parent=119 // pred_check
          %p809 = pneg %p84
        $region122: #{_lambda_.2} parent=119 // pred_check_branch
          %811 = sbr.rel (%p809) target = $region124
        $region123: #{_lambda_.2} parent=119 // pred_region
          %813 = dma.done [#allocation14], 384
        $region124: #{_lambda_.2} parent=119 // pred_fallthru
          _
        // Predicated region
        $region125: #{_lambda_.2} parent=119 // pred_check
          %p814 = pneg %p105
        $region126: #{_lambda_.2} parent=119 // pred_check_branch
          %816 = sbr.rel (%p814) target = $region128
        $region127: #{_lambda_.2} parent=119 // pred_region
          %818 = dma.done [#allocation16], 768
        $region128: #{_lambda_.2} parent=119 // pred_fallthru
          _
        // Predicated region
        $region129: #{_lambda_.2} parent=119 // pred_check
          %p819 = pneg %p168
        $region130: #{_lambda_.2} parent=119 // pred_check_branch
          %821 = sbr.rel (%p819) target = $region132
        $region131: #{_lambda_.2} parent=119 // pred_region
          %823 = dma.done [#allocation16], 768
        $region132: #{_lambda_.2} parent=119 // pred_fallthru
          _
        // Predicated region
        $region133: #{_lambda_.2} parent=119 // pred_check
          %p824 = pneg %p252
        $region134: #{_lambda_.2} parent=119 // pred_check_branch
          %826 = sbr.rel (%p824) target = $region136
        $region135: #{_lambda_.2} parent=119 // pred_region
          %828 = dma.done [#allocation19], 1152
        $region136: #{_lambda_.2} parent=119 // pred_fallthru
          _
        // Predicated region
        $region137: #{_lambda_.2} parent=119 // pred_check
          %p829 = pneg %p336
        $region138: #{_lambda_.2} parent=119 // pred_check_branch
          %831 = sbr.rel (%p829) target = $region140
        $region139: #{_lambda_.2} parent=119 // pred_region
          %833 = dma.done [#allocation19], 1536
        $region140: #{_lambda_.2} parent=119 // pred_fallthru
          _
        // Predicated region
        $region141: #{_lambda_.2} parent=119 // pred_check
          %p834 = pneg %p357
        $region142: #{_lambda_.2} parent=119 // pred_check_branch
          %836 = sbr.rel (%p834) target = $region144
        $region143: #{_lambda_.2} parent=119 // pred_region
          %838 = dma.done [#allocation22], 1152
        $region144: #{_lambda_.2} parent=119 // pred_fallthru
          _
        // Predicated region
        $region145: #{_lambda_.2} parent=119 // pred_check
          %p839 = pneg %p420
        $region146: #{_lambda_.2} parent=119 // pred_check_branch
          %841 = sbr.rel (%p839) target = $region148
        $region147: #{_lambda_.2} parent=119 // pred_region
          %843 = dma.done [#allocation22], 1152
        $region148: #{_lambda_.2} parent=119 // pred_fallthru
          _
        // Predicated region
        $region149: #{_lambda_.2} parent=119 // pred_check
          %p844 = pneg %p441
        $region150: #{_lambda_.2} parent=119 // pred_check_branch
          %846 = sbr.rel (%p844) target = $region152
        $region151: #{_lambda_.2} parent=119 // pred_region
          %848 = dma.done [#allocation25], 640
        $region152: #{_lambda_.2} parent=119 // pred_fallthru
          _
        // Predicated region
        $region153: #{_lambda_.2} parent=119 // pred_check
          %p849 = pneg %p504
        $region154: #{_lambda_.2} parent=119 // pred_check_branch
          %851 = sbr.rel (%p849) target = $region156
        $region155: #{_lambda_.2} parent=119 // pred_region
          %853 = dma.done [#allocation25], 640
        $region156: #{_lambda_.2} parent=119 // pred_fallthru
          _
        // Predicated region
        $region157: #{_lambda_.2} parent=119 // pred_check
          %p854 = pneg %p525
        $region158: #{_lambda_.2} parent=119 // pred_check_branch
          %856 = sbr.rel (%p854) target = $region160
        $region159: #{_lambda_.2} parent=119 // pred_region
          %858 = dma.done [#allocation28], 256
        $region160: #{_lambda_.2} parent=119 // pred_fallthru
          _
        %p859 = scmp.lt.s32.totalorder %s42, 1
        %s860 = scalar_select %p859, %s42, 1
        %s861 = smul.addr %s860, 8
        %s862 = smul.addr %s861, 8
        %s863 = scalar_lea.vmem %s0, %s862
        %p864 = pneg %p63
        %p865 = pneg %p60
        %p866 = pneg %p84
        %p867 = pneg %p81
        %p868 = pneg %p105
        %p869 = pneg %p102
        %p870 = pneg %p126
        %p871 = pneg %p123
        %p872 = pneg %p147
        %p873 = pneg %p144
        %p874 = pneg %p168
        %p875 = pneg %p165
        %p876 = pneg %p189
        %p877 = pneg %p186
        %p878 = pneg %p210
        %p879 = pneg %p207
        %p880 = pneg %p231
        %p881 = pneg %p228
        %p882 = pneg %p252
        %p883 = pneg %p249
        %p884 = pneg %p273
        %p885 = pneg %p270
        %p886 = pneg %p294
        %p887 = pneg %p291
        %p888 = pneg %p315
        %p889 = pneg %p312
        %p890 = pneg %p336
        %p891 = pneg %p333
        %p892 = pneg %p357
        %p893 = pneg %p354
        %p894 = pneg %p378
        %p895 = pneg %p375
        %p896 = pneg %p399
        %p897 = pneg %p396
        %p898 = pneg %p420
        %p899 = pneg %p417
        %p900 = pneg %p441
        %p901 = pneg %p438
        %p902 = pneg %p462
        %p903 = pneg %p459
        %p904 = pneg %p483
        %p905 = pneg %p480
        %p906 = pneg %p504
        %p907 = pneg %p501
        %p908 = pneg %p525
        %p909 = pneg %p522
        %p910 = pneg %p546
        %p911 = pneg %p543
        %p912 = pneg %p567
        %p913 = pneg %p564
        %p914 = pneg %p593
        %p915 = pneg %p590
        %p916 = scmp.lt.s32.totalorder %s42, 1
        %s917 = scalar_select %p916, %s42, 1
        %s918 = smul.addr %s917, 8
        %s919 = scalar_lea.vmem %s25, %s918
        %p920 = scmp.lt.s32.totalorder %s42, 1
        %s921 = scalar_select %p920, %s42, 1
        %s922 = smul.addr %s921, 8
        %s923 = smul.addr %s922, 8
        %s924 = scalar_lea.vmem %s0, %s923
        %p925 = scmp.lt.s32.totalorder %s42, 1
        %s926 = scalar_select %p925, %s42, 1
        %s927 = smul.addr %s926, 8
        %s928 = scalar_lea.vmem %s25, %s927
        %s929 = scalar_lea.vmem %s924, 1
        %v930 = vld [vmem:[%s929] ss:$2 sm:$0xff]
        %s931 = scalar_lea.vmem %s924, 17
        %v932 = vld [vmem:[%s931] ss:$2 sm:$0xff]
        %s933 = scalar_lea.vmem %s924, 33
        %v934 = vld [vmem:[%s933] ss:$2 sm:$0xff]
        %s935 = scalar_lea.vmem %s924, 49
        %v936 = vld [vmem:[%s935] ss:$2 sm:$0xff]
        %vm941 = vcmask 1040384
        %v942 = vrot.slane %v930, 7
        %v943 = vrot.slane %v932, 7
        %v944 = vsel %vm941, %v942, %v943
        %v945 = vrot.slane %v934, 7
        %v946 = vsel %vm941, %v943, %v945
        %v947 = vrot.slane %v936, 7
        %v948 = vsel %vm941, %v945, %v947
        %v953 = vsel %vm941, 0.0, %v942
        %v954 = vld [vmem:[%s924] ss:$2 sm:$0xff]
        %s955 = scalar_lea.vmem %s924, 16
        %v956 = vld [vmem:[%s955] ss:$2 sm:$0xff]
        %s957 = scalar_lea.vmem %s924, 32
        %v958 = vld [vmem:[%s957] ss:$2 sm:$0xff]
        %s959 = scalar_lea.vmem %s924, 48
        %v960 = vld [vmem:[%s959] ss:$2 sm:$0xff]
        %965 = vrot.lane.b32.xlu0 %v954, 8
        %v966 = vpop.permute.xlu0 %965
        %967 = vrot.lane.b32.xlu0 %v956, 8
        %v968 = vpop.permute.xlu0 %967
        %969 = vrot.lane.b32.xlu0 %v958, 8
        %v970 = vpop.permute.xlu0 %969
        %971 = vrot.lane.b32.xlu0 %v960, 8
        %v972 = vpop.permute.xlu0 %971
        %977 = vrot.lane.b32.xlu0 %v930, 16
        %v978 = vpop.permute.xlu0 %977
        %979 = vrot.lane.b32.xlu0 %v932, 16
        %v980 = vpop.permute.xlu0 %979
        %981 = vrot.lane.b32.xlu0 %v934, 16
        %v982 = vpop.permute.xlu0 %981
        %983 = vrot.lane.b32.xlu0 %v936, 16
        %v984 = vpop.permute.xlu0 %983
        %vm989 = vcmask 64512
        %v990 = vsel %vm989, %v953, %v966
        %v991 = vsel %vm989, %v944, %v968
        %v992 = vsel %vm989, %v946, %v970
        %v993 = vsel %vm989, %v948, %v972
        %vm994 = vcmask 130048
        %v995 = vsel %vm994, %v990, %v978
        %v996 = vsel %vm994, %v991, %v980
        %v997 = vsel %vm994, %v992, %v982
        %v998 = vsel %vm994, %v993, %v984
        %v999 = vld [vmem:[#allocation13] sm:$0xff]
        %v1000 = vld [vmem:[#allocation13 + $0x8] sm:$0xff]
        %v1001 = vld [vmem:[#allocation13 + $0x10] sm:$0xff]
        %vm1002 = vcmask 195584
        %v1004 = vsel %vm1002, %v995, 0
        %v1007 = vsel %vm1002, %v996, 0
        %v1010 = vsel %vm1002, %v997, 0
        %v1013 = vsel %vm1002, %v998, 0
        %1015 = vmatpush.msra.mxu0 0.0
        %1016 = vmatpush.msra.mxu0 0.0
        %1017 = vmatpush.msra.mxu0 0.0
        %1018 = vmatpush.msra.mxu0 0.0
        %1019 = vmatpush.msra.mxu0 0.0
        %1020 = vmatpush.msra.mxu0 0.0
        %1021 = vmatpush.msra.mxu0 0.0
        %1022 = vmatpush.msra.mxu0 0.0
        %1023 = vmatpush.msra.mxu0 0.0
        %1024 = vmatpush.msra.mxu0 0.0
        %1025 = vmatpush.msra.mxu0 0.0
        %1026 = vmatpush.msra.mxu0 0.0
        %1027 = vmatpush.msra.mxu0 0.0
        %1028 = vmatpush.msra.mxu0 %v1001
        %1029 = vmatpush.msra.mxu0 %v1000
        %1030 = vmatpush.msra.mxu0 %v999
        %1031 = vmatmul.f32.gmra.mxu0 %v1004
        %v1032 = vpop.f32.mrf.mxu0
        %v1033 = vadd.f32 0.0, %v1032
        %1034 = vmatmul.f32.gmra.mxu0 %v1007
        %v1035 = vpop.f32.mrf.mxu0
        %v1036 = vadd.f32 0.0, %v1035
        %1037 = vmatmul.f32.gmra.mxu0 %v1010
        %v1038 = vpop.f32.mrf.mxu0
        %v1039 = vadd.f32 0.0, %v1038
        %1040 = vmatmul.f32.gmra.mxu0 %v1013
        %v1041 = vpop.f32.mrf.mxu0
        %v1042 = vadd.f32 0.0, %v1041
        %1043 = vdwg.mxu0
        %v1044 = vmax.f32 %v1033, 0.0
        %v1045 = vmax.f32 %v1036, 0.0
        %v1046 = vmax.f32 %v1039, 0.0
        %v1047 = vmax.f32 %v1042, 0.0
        %1048 = vst.msk [vmem:[#allocation2] sm:$0xff] %vm994, %v1044
        %1049 = vst.msk [vmem:[#allocation2 + $0x8] sm:$0xff] %vm994, %v1045
        %1050 = vst.msk [vmem:[#allocation2 + $0x10] sm:$0xff] %vm994, %v1046
        %1051 = vst.msk [vmem:[#allocation2 + $0x18] sm:$0xff] %vm994, %v1047
        %v1052 = vld [vmem:[%s4] sm:$0x1]
        %v1053 = vld [vmem:[#allocation2] sm:$0xff]
        %v1054 = vld [vmem:[#allocation2 + $0x8] sm:$0xff]
        %v1055 = vld [vmem:[#allocation2 + $0x10] sm:$0xff]
        %v1056 = vld [vmem:[#allocation2 + $0x18] sm:$0xff]
        %v1061 = vrot.slane %v1053, 7
        %v1062 = vrot.slane %v1054, 7
        %v1063 = vsel %vm941, %v1061, %v1062
        %v1064 = vrot.slane %v1055, 7
        %v1065 = vsel %vm941, %v1062, %v1064
        %v1066 = vrot.slane %v1056, 7
        %v1067 = vsel %vm941, %v1064, %v1066
        %v1072 = vsel %vm941, %v1052, %v1061
        %vm1073 = vcmask 1046528
        %v1074 = vrot.slane %v1053, 1
        %v1075 = vrot.slane %v1054, 1
        %v1076 = vsel %vm1073, %v1074, %v1075
        %v1077 = vrot.slane %v1055, 1
        %v1078 = vsel %vm1073, %v1075, %v1077
        %v1079 = vrot.slane %v1056, 1
        %v1080 = vsel %vm1073, %v1077, %v1079
        %v1083 = vperm.slane %v1052, 0
        %v1085 = vsel %vm1073, %v1079, %v1083
        %1086 = vrot.lane.b32.xlu0 %v1053, 16
        %v1087 = vpop.permute.xlu0 %1086
        %1088 = vrot.lane.b32.xlu0 %v1054, 16
        %v1089 = vpop.permute.xlu0 %1088
        %1090 = vrot.lane.b32.xlu0 %v1055, 16
        %v1091 = vpop.permute.xlu0 %1090
        %1092 = vrot.lane.b32.xlu0 %v1056, 16
        %v1093 = vpop.permute.xlu0 %1092
        %1099 = vrot.lane.b32.xlu0 %v1076, 32
        %v1100 = vpop.permute.xlu0 %1099
        %1101 = vrot.lane.b32.xlu0 %v1078, 32
        %v1102 = vpop.permute.xlu0 %1101
        %1103 = vrot.lane.b32.xlu0 %v1080, 32
        %v1104 = vpop.permute.xlu0 %1103
        %1105 = vrot.lane.b32.xlu0 %v1085, 32
        %v1106 = vpop.permute.xlu0 %1105
        %v1111 = vsel %vm994, %v1072, %v1087
        %v1112 = vsel %vm994, %v1063, %v1089
        %v1113 = vsel %vm994, %v1065, %v1091
        %v1114 = vsel %vm994, %v1067, %v1093
        %vm1115 = vcmask 261120
        %v1116 = vsel %vm1115, %v1111, %v1100
        %v1117 = vsel %vm1115, %v1112, %v1102
        %v1118 = vsel %vm1115, %v1113, %v1104
        %v1119 = vsel %vm1115, %v1114, %v1106
        %v1120 = vld [vmem:[#allocation15] sm:$0xff]
        %v1121 = vld [vmem:[#allocation15 + $0x8] sm:$0xff]
        %v1122 = vld [vmem:[#allocation15 + $0x10] sm:$0xff]
        %v1123 = vld [vmem:[#allocation15 + $0x18] sm:$0xff]
        %v1124 = vld [vmem:[#allocation15 + $0x20] sm:$0xff]
        %v1125 = vld [vmem:[#allocation15 + $0x28] sm:$0xff]
        %v1126 = vld [vmem:[%s3] sm:$0x1]
        %v1128 = vperm.slane %v1126, 0
        %vm1130 = vcmask 392192
        %v1132 = vsel %vm1130, %v1116, 0
        %v1135 = vsel %vm1130, %v1117, 0
        %v1138 = vsel %vm1130, %v1118, 0
        %v1141 = vsel %vm1130, %v1119, 0
        %1143 = vmatpush.msra.mxu0 0.0
        %1144 = vmatpush.msra.mxu0 0.0
        %1145 = vmatpush.msra.mxu0 0.0
        %1146 = vmatpush.msra.mxu0 0.0
        %1147 = vmatpush.msra.mxu0 0.0
        %1148 = vmatpush.msra.mxu0 0.0
        %1149 = vmatpush.msra.mxu0 0.0
        %1150 = vmatpush.msra.mxu0 0.0
        %1151 = vmatpush.msra.mxu0 0.0
        %1152 = vmatpush.msra.mxu0 0.0
        %1153 = vmatpush.msra.mxu0 %v1125
        %1154 = vmatpush.msra.mxu0 %v1124
        %1155 = vmatpush.msra.mxu0 %v1123
        %1156 = vmatpush.msra.mxu0 %v1122
        %1157 = vmatpush.msra.mxu0 %v1121
        %1158 = vmatpush.msra.mxu0 %v1120
        %1159 = vmatmul.f32.gmra.mxu0 %v1132
        %v1160 = vpop.f32.mrf.mxu0
        %v1161 = vadd.f32 %v1128, %v1160
        %1162 = vmatmul.f32.gmra.mxu0 %v1135
        %v1163 = vpop.f32.mrf.mxu0
        %v1164 = vadd.f32 %v1128, %v1163
        %1165 = vmatmul.f32.gmra.mxu0 %v1138
        %v1166 = vpop.f32.mrf.mxu0
        %v1167 = vadd.f32 %v1128, %v1166
        %1168 = vmatmul.f32.gmra.mxu0 %v1141
        %v1169 = vpop.f32.mrf.mxu0
        %v1170 = vadd.f32 %v1128, %v1169
        %1171 = vdwg.mxu0
        %v1172 = vmax.f32 %v1161, 0.0
        %v1173 = vmax.f32 %v1164, 0.0
        %v1174 = vmax.f32 %v1167, 0.0
        %v1175 = vmax.f32 %v1170, 0.0
        %v1176 = vadd.f32 %v1172, %v1053
        %v1177 = vadd.f32 %v1173, %v1054
        %v1178 = vadd.f32 %v1174, %v1055
        %v1179 = vadd.f32 %v1175, %v1056
        %1180 = vst.msk [vmem:[#allocation3] sm:$0xff] %vm994, %v1176
        %1181 = vst.msk [vmem:[#allocation3 + $0x8] sm:$0xff] %vm994, %v1177
        %1182 = vst.msk [vmem:[#allocation3 + $0x10] sm:$0xff] %vm994, %v1178
        %1183 = vst.msk [vmem:[#allocation3 + $0x18] sm:$0xff] %vm994, %v1179
        %s1184 = scalar_lea.vmem [#allocation3], 1
        %v1185 = vld [vmem:[%s1184] ss:$2 sm:$0xff]
        %s1186 = scalar_lea.vmem [#allocation3], 17
        %v1187 = vld [vmem:[%s1186] ss:$2 sm:$0xff]
        %v1190 = vrot.slane %v1185, 7
        %v1191 = vrot.slane %v1187, 7
        %v1192 = vsel %vm941, %v1190, %v1191
        %v1195 = vsel %vm941, 0.0, %v1190
        %v1196 = vld [vmem:[#allocation3] ss:$2 sm:$0xff]
        %s1197 = scalar_lea.vmem [#allocation3], 16
        %v1198 = vld [vmem:[%s1197] ss:$2 sm:$0xff]
        %1201 = vrot.lane.b32.xlu0 %v1196, 16
        %v1202 = vpop.permute.xlu0 %1201
        %1203 = vrot.lane.b32.xlu0 %v1198, 16
        %v1204 = vpop.permute.xlu0 %1203
        %1207 = vrot.lane.b32.xlu0 %v1185, 32
        %v1208 = vpop.permute.xlu0 %1207
        %1209 = vrot.lane.b32.xlu0 %v1187, 32
        %v1210 = vpop.permute.xlu0 %1209
        %v1213 = vsel %vm994, %v1195, %v1202
        %v1214 = vsel %vm994, %v1192, %v1204
        %v1215 = vsel %vm1115, %v1213, %v1208
        %v1216 = vsel %vm1115, %v1214, %v1210
        %v1217 = vld [vmem:[#allocation17] sm:$0xff]
        %v1218 = vld [vmem:[#allocation17 + $0x8] sm:$0xff]
        %v1219 = vld [vmem:[#allocation17 + $0x10] sm:$0xff]
        %v1220 = vld [vmem:[#allocation17 + $0x18] sm:$0xff]
        %v1221 = vld [vmem:[#allocation17 + $0x20] sm:$0xff]
        %v1222 = vld [vmem:[#allocation17 + $0x28] sm:$0xff]
        %v1224 = vsel %vm1130, %v1215, 0
        %v1227 = vsel %vm1130, %v1216, 0
        %1229 = vmatpush.msra.mxu0 0.0
        %1230 = vmatpush.msra.mxu0 0.0
        %1231 = vmatpush.msra.mxu0 0.0
        %1232 = vmatpush.msra.mxu0 0.0
        %1233 = vmatpush.msra.mxu0 0.0
        %1234 = vmatpush.msra.mxu0 0.0
        %1235 = vmatpush.msra.mxu0 0.0
        %1236 = vmatpush.msra.mxu0 0.0
        %1237 = vmatpush.msra.mxu0 0.0
        %1238 = vmatpush.msra.mxu0 0.0
        %1239 = vmatpush.msra.mxu0 %v1222
        %1240 = vmatpush.msra.mxu0 %v1221
        %1241 = vmatpush.msra.mxu0 %v1220
        %1242 = vmatpush.msra.mxu0 %v1219
        %1243 = vmatpush.msra.mxu0 %v1218
        %1244 = vmatpush.msra.mxu0 %v1217
        %1245 = vmatmul.f32.gmra.mxu0 %v1224
        %v1246 = vpop.f32.mrf.mxu0
        %v1247 = vadd.f32 0.0, %v1246
        %1248 = vmatmul.f32.gmra.mxu0 %v1227
        %v1249 = vpop.f32.mrf.mxu0
        %v1250 = vadd.f32 0.0, %v1249
        %1251 = vdwg.mxu0
        %v1252 = vmax.f32 %v1247, 0.0
        %v1253 = vmax.f32 %v1250, 0.0
        %1254 = vst.msk [vmem:[#allocation4] sm:$0xff] %vm1002, %v1252
        %1255 = vst.msk [vmem:[#allocation4 + $0x8] sm:$0xff] %vm1002, %v1253
        %v1256 = vld [vmem:[%s8] sm:$0x1]
        %v1257 = vld [vmem:[#allocation4] sm:$0xff]
        %v1258 = vld [vmem:[#allocation4 + $0x8] sm:$0xff]
        %v1261 = vrot.slane %v1257, 7
        %v1262 = vrot.slane %v1258, 7
        %v1263 = vsel %vm941, %v1261, %v1262
        %v1266 = vsel %vm941, %v1256, %v1261
        %v1267 = vrot.slane %v1257, 1
        %v1268 = vrot.slane %v1258, 1
        %v1269 = vsel %vm1073, %v1267, %v1268
        %v1272 = vperm.slane %v1256, 0
        %v1274 = vsel %vm1073, %v1268, %v1272
        %1275 = vrot.lane.b32.xlu0 %v1257, 24
        %v1276 = vpop.permute.xlu0 %1275
        %1277 = vrot.lane.b32.xlu0 %v1258, 24
        %v1278 = vpop.permute.xlu0 %1277
        %1282 = vrot.lane.b32.xlu0 %v1269, 48
        %v1283 = vpop.permute.xlu0 %1282
        %1284 = vrot.lane.b32.xlu0 %v1274, 48
        %v1285 = vpop.permute.xlu0 %1284
        %v1288 = vsel %vm1002, %v1266, %v1276
        %v1289 = vsel %vm1002, %v1263, %v1278
        %v1290 = vsel %vm1130, %v1288, %v1283
        %v1291 = vsel %vm1130, %v1289, %v1285
        %v1292 = vld [vmem:[%s6] sm:$0xff]
        %v1293 = vld [vmem:[%s6 + $0x8] sm:$0xff]
        %v1294 = vld [vmem:[%s6 + $0x10] sm:$0xff]
        %v1295 = vld [vmem:[%s6 + $0x18] sm:$0xff]
        %v1296 = vld [vmem:[%s6 + $0x20] sm:$0xff]
        %v1297 = vld [vmem:[%s6 + $0x28] sm:$0xff]
        %v1298 = vld [vmem:[%s6 + $0x30] sm:$0xff]
        %v1299 = vld [vmem:[%s6 + $0x38] sm:$0xff]
        %v1300 = vld [vmem:[%s6 + $0x40] sm:$0xff]
        %v1301 = vld [vmem:[%s7] sm:$0x1]
        %v1303 = vperm.slane %v1301, 0
        %vm1305 = vcmask 588800
        %v1307 = vsel %vm1305, %v1290, 0
        %v1310 = vsel %vm1305, %v1291, 0
        %1312 = vmatpush.msra.mxu0 0.0
        %1313 = vmatpush.msra.mxu0 0.0
        %1314 = vmatpush.msra.mxu0 0.0
        %1315 = vmatpush.msra.mxu0 0.0
        %1316 = vmatpush.msra.mxu0 0.0
        %1317 = vmatpush.msra.mxu0 0.0
        %1318 = vmatpush.msra.mxu0 0.0
        %1319 = vmatpush.msra.mxu0 %v1300
        %1320 = vmatpush.msra.mxu0 %v1299
        %1321 = vmatpush.msra.mxu0 %v1298
        %1322 = vmatpush.msra.mxu0 %v1297
        %1323 = vmatpush.msra.mxu0 %v1296
        %1324 = vmatpush.msra.mxu0 %v1295
        %1325 = vmatpush.msra.mxu0 %v1294
        %1326 = vmatpush.msra.mxu0 %v1293
        %1327 = vmatpush.msra.mxu0 %v1292
        %1328 = vmatmul.f32.gmra.mxu0 %v1307
        %v1329 = vpop.f32.mrf.mxu0
        %v1330 = vadd.f32 %v1303, %v1329
        %1331 = vmatmul.f32.gmra.mxu0 %v1310
        %v1332 = vpop.f32.mrf.mxu0
        %v1333 = vadd.f32 %v1303, %v1332
        %1334 = vdwg.mxu0
        %v1335 = vmax.f32 %v1330, 0.0
        %v1336 = vmax.f32 %v1333, 0.0
        %v1337 = vadd.f32 %v1335, %v1257
        %v1338 = vadd.f32 %v1336, %v1258
        %1339 = vst.msk [vmem:[#allocation5] sm:$0xff] %vm1002, %v1337
        %1340 = vst.msk [vmem:[#allocation5 + $0x8] sm:$0xff] %vm1002, %v1338
        %s1341 = scalar_lea.vmem [#allocation5], 1
        %v1342 = vld [vmem:[%s1341] ss:$2 sm:$0xff]
        %v1344 = vrot.slane %v1342, 7
        %v1346 = vsel %vm941, 0.0, %v1344
        %v1347 = vld [vmem:[#allocation5] ss:$2 sm:$0xff]
        %1349 = vrot.lane.b32.xlu0 %v1347, 24
        %v1350 = vpop.permute.xlu0 %1349
        %1352 = vrot.lane.b32.xlu0 %v1342, 48
        %v1353 = vpop.permute.xlu0 %1352
        %v1355 = vsel %vm1002, %v1346, %v1350
        %v1356 = vsel %vm1130, %v1355, %v1353
        %v1357 = vld [vmem:[#allocation18] sm:$0xff]
        %v1358 = vld [vmem:[#allocation18 + $0x8] sm:$0xff]
        %v1359 = vld [vmem:[#allocation18 + $0x10] sm:$0xff]
        %v1360 = vld [vmem:[#allocation18 + $0x18] sm:$0xff]
        %v1361 = vld [vmem:[#allocation18 + $0x20] sm:$0xff]
        %v1362 = vld [vmem:[#allocation18 + $0x28] sm:$0xff]
        %v1363 = vld [vmem:[#allocation18 + $0x30] sm:$0xff]
        %v1364 = vld [vmem:[#allocation18 + $0x38] sm:$0xff]
        %v1365 = vld [vmem:[#allocation18 + $0x40] sm:$0xff]
        %v1367 = vsel %vm1305, %v1356, 0
        %1369 = vmatpush.msra.mxu0 0.0
        %1370 = vmatpush.msra.mxu0 0.0
        %1371 = vmatpush.msra.mxu0 0.0
        %1372 = vmatpush.msra.mxu0 0.0
        %1373 = vmatpush.msra.mxu0 0.0
        %1374 = vmatpush.msra.mxu0 0.0
        %1375 = vmatpush.msra.mxu0 0.0
        %1376 = vmatpush.msra.mxu0 %v1365
        %1377 = vmatpush.msra.mxu0 %v1364
        %1378 = vmatpush.msra.mxu0 %v1363
        %1379 = vmatpush.msra.mxu0 %v1362
        %1380 = vmatpush.msra.mxu0 %v1361
        %1381 = vmatpush.msra.mxu0 %v1360
        %1382 = vmatpush.msra.mxu0 %v1359
        %1383 = vmatpush.msra.mxu0 %v1358
        %1384 = vmatpush.msra.mxu0 %v1357
        %1385 = vmatmul.f32.gmra.mxu0 %v1367
        %v1386 = vpop.f32.mrf.mxu0
        %v1387 = vadd.f32 0.0, %v1386
        %1388 = vdwg.mxu0
        %v1389 = vmax.f32 %v1387, 0.0
        %1390 = vst.msk [vmem:[#allocation6] sm:$0xff] %vm1115, %v1389
        %v1391 = vld [vmem:[%s12] sm:$0x1]
        %v1392 = vld [vmem:[#allocation6] sm:$0xff]
        %v1394 = vrot.slane %v1392, 7
        %v1396 = vsel %vm941, %v1391, %v1394
        %v1397 = vrot.slane %v1392, 1
        %v1400 = vperm.slane %v1391, 0
        %v1402 = vsel %vm1073, %v1397, %v1400
        %1403 = vrot.lane.b32.xlu0 %v1392, 32
        %v1404 = vpop.permute.xlu0 %1403
        %1407 = vrot.lane.b32.xlu0 %v1402, 64
        %v1408 = vpop.permute.xlu0 %1407
        %v1410 = vsel %vm1115, %v1396, %v1404
        %vm1411 = vcmask 523264
        %v1412 = vsel %vm1411, %v1410, %v1408
        %v1413 = vld [vmem:[%s10] sm:$0xff]
        %v1414 = vld [vmem:[%s10 + $0x8] sm:$0xff]
        %v1415 = vld [vmem:[%s10 + $0x10] sm:$0xff]
        %v1416 = vld [vmem:[%s10 + $0x18] sm:$0xff]
        %v1417 = vld [vmem:[%s10 + $0x20] sm:$0xff]
        %v1418 = vld [vmem:[%s10 + $0x28] sm:$0xff]
        %v1419 = vld [vmem:[%s10 + $0x30] sm:$0xff]
        %v1420 = vld [vmem:[%s10 + $0x38] sm:$0xff]
        %v1421 = vld [vmem:[%s10 + $0x40] sm:$0xff]
        %v1422 = vld [vmem:[%s10 + $0x48] sm:$0xff]
        %v1423 = vld [vmem:[%s10 + $0x50] sm:$0xff]
        %v1424 = vld [vmem:[%s10 + $0x58] sm:$0xff]
        %v1425 = vld [vmem:[%s11] sm:$0x1]
        %v1427 = vperm.slane %v1425, 0
        %vm1429 = vcmask 785408
        %v1431 = vsel %vm1429, %v1412, 0
        %1433 = vmatpush.msra.mxu0 0.0
        %1434 = vmatpush.msra.mxu0 0.0
        %1435 = vmatpush.msra.mxu0 0.0
        %1436 = vmatpush.msra.mxu0 0.0
        %1437 = vmatpush.msra.mxu0 %v1424
        %1438 = vmatpush.msra.mxu0 %v1423
        %1439 = vmatpush.msra.mxu0 %v1422
        %1440 = vmatpush.msra.mxu0 %v1421
        %1441 = vmatpush.msra.mxu0 %v1420
        %1442 = vmatpush.msra.mxu0 %v1419
        %1443 = vmatpush.msra.mxu0 %v1418
        %1444 = vmatpush.msra.mxu0 %v1417
        %1445 = vmatpush.msra.mxu0 %v1416
        %1446 = vmatpush.msra.mxu0 %v1415
        %1447 = vmatpush.msra.mxu0 %v1414
        %1448 = vmatpush.msra.mxu0 %v1413
        %1449 = vmatmul.f32.gmra.mxu0 %v1431
        %v1450 = vpop.f32.mrf.mxu0
        %v1451 = vadd.f32 %v1427, %v1450
        %1452 = vdwg.mxu0
        %v1453 = vmax.f32 %v1451, 0.0
        %v1454 = vadd.f32 %v1453, %v1392
        %1455 = vst.msk [vmem:[#allocation7] sm:$0xff] %vm1115, %v1454
        %v1456 = vld [vmem:[#allocation7] sm:$0xff]
        %v1458 = vrot.slane %v1456, 7
        %v1460 = vsel %vm941, 0.0, %v1458
        %v1461 = vrot.slane %v1456, 1
        %v1463 = vsel %vm1073, %v1461, 0.0
        %1464 = vrot.lane.b32.xlu0 %v1456, 32
        %v1465 = vpop.permute.xlu0 %1464
        %1468 = vrot.lane.b32.xlu0 %v1463, 64
        %v1469 = vpop.permute.xlu0 %1468
        %v1471 = vsel %vm1115, %v1460, %v1465
        %v1472 = vsel %vm1411, %v1471, %v1469
        %v1473 = vld [vmem:[#allocation20] sm:$0xff]
        %v1474 = vld [vmem:[#allocation20 + $0x8] sm:$0xff]
        %v1475 = vld [vmem:[#allocation20 + $0x10] sm:$0xff]
        %v1476 = vld [vmem:[#allocation20 + $0x18] sm:$0xff]
        %v1477 = vld [vmem:[#allocation20 + $0x20] sm:$0xff]
        %v1478 = vld [vmem:[#allocation20 + $0x28] sm:$0xff]
        %v1479 = vld [vmem:[#allocation20 + $0x30] sm:$0xff]
        %v1480 = vld [vmem:[#allocation20 + $0x38] sm:$0xff]
        %v1481 = vld [vmem:[#allocation20 + $0x40] sm:$0xff]
        %v1482 = vld [vmem:[#allocation20 + $0x48] sm:$0xff]
        %v1483 = vld [vmem:[#allocation20 + $0x50] sm:$0xff]
        %v1484 = vld [vmem:[#allocation20 + $0x58] sm:$0xff]
        %v1486 = vsel %vm1429, %v1472, 0
        %1488 = vmatpush.msra.mxu0 0.0
        %1489 = vmatpush.msra.mxu0 0.0
        %1490 = vmatpush.msra.mxu0 0.0
        %1491 = vmatpush.msra.mxu0 0.0
        %1492 = vmatpush.msra.mxu0 %v1484
        %1493 = vmatpush.msra.mxu0 %v1483
        %1494 = vmatpush.msra.mxu0 %v1482
        %1495 = vmatpush.msra.mxu0 %v1481
        %1496 = vmatpush.msra.mxu0 %v1480
        %1497 = vmatpush.msra.mxu0 %v1479
        %1498 = vmatpush.msra.mxu0 %v1478
        %1499 = vmatpush.msra.mxu0 %v1477
        %1500 = vmatpush.msra.mxu0 %v1476
        %1501 = vmatpush.msra.mxu0 %v1475
        %1502 = vmatpush.msra.mxu0 %v1474
        %1503 = vmatpush.msra.mxu0 %v1473
        %1504 = vmatmul.f32.gmra.mxu0 %v1486
        %v1505 = vpop.f32.mrf.mxu0
        %v1506 = vadd.f32 0.0, %v1505
        %1507 = vdwg.mxu0
        %v1508 = vmax.f32 %v1506, 0.0
        %vm1509 = vcmask 179200
        %1510 = vst.msk [vmem:[#allocation8] sm:$0xff] %vm1509, %v1508
        %v1511 = vld [vmem:[%s16] sm:$0x1]
        %v1512 = vld [vmem:[#allocation8] sm:$0xff]
        %v1514 = vrot.slane %v1512, 7
        %v1516 = vsel %vm941, %v1511, %v1514
        %v1517 = vrot.slane %v1512, 1
        %v1520 = vperm.slane %v1511, 0
        %v1522 = vsel %vm1073, %v1517, %v1520
        %1523 = vrot.lane.b32.xlu0 %v1512, 22
        %v1524 = vpop.permute.xlu0 %1523
        %1527 = vrot.lane.b32.xlu0 %v1522, 44
        %v1528 = vpop.permute.xlu0 %1527
        %v1530 = vsel %vm1509, %v1516, %v1524
        %vm1531 = vcmask 359424
        %v1532 = vsel %vm1531, %v1530, %v1528
        %v1533 = vld [vmem:[#allocation21] sm:$0xff]
        %v1534 = vld [vmem:[#allocation21 + $0x8] sm:$0xff]
        %v1535 = vld [vmem:[#allocation21 + $0x10] sm:$0xff]
        %v1536 = vld [vmem:[#allocation21 + $0x18] sm:$0xff]
        %v1537 = vld [vmem:[#allocation21 + $0x20] sm:$0xff]
        %v1538 = vld [vmem:[#allocation21 + $0x28] sm:$0xff]
        %v1539 = vld [vmem:[#allocation21 + $0x30] sm:$0xff]
        %v1540 = vld [vmem:[#allocation21 + $0x38] sm:$0xff]
        %v1541 = vld [vmem:[#allocation21 + $0x40] sm:$0x3]
        %v1542 = vld [vmem:[%s15] sm:$0x1]
        %v1544 = vperm.slane %v1542, 0
        %vm1546 = vcmask 539648
        %v1548 = vsel %vm1546, %v1532, 0
        %vm1550 = vcmask 1041408
        %v1552 = vsel %vm1550, %v1541, 0
        %1554 = vmatpush.msra.mxu0 0.0
        %1555 = vmatpush.msra.mxu0 0.0
        %1556 = vmatpush.msra.mxu0 0.0
        %1557 = vmatpush.msra.mxu0 0.0
        %1558 = vmatpush.msra.mxu0 0.0
        %1559 = vmatpush.msra.mxu0 0.0
        %1560 = vmatpush.msra.mxu0 0.0
        %1561 = vmatpush.msra.mxu0 %v1552
        %1562 = vmatpush.msra.mxu0 %v1540
        %1563 = vmatpush.msra.mxu0 %v1539
        %1564 = vmatpush.msra.mxu0 %v1538
        %1565 = vmatpush.msra.mxu0 %v1537
        %1566 = vmatpush.msra.mxu0 %v1536
        %1567 = vmatpush.msra.mxu0 %v1535
        %1568 = vmatpush.msra.mxu0 %v1534
        %1569 = vmatpush.msra.mxu0 %v1533
        %1570 = vmatmul.f32.gmra.mxu0 %v1548
        %v1571 = vpop.f32.mrf.mxu0
        %v1572 = vadd.f32 %v1544, %v1571
        %1573 = vdwg.mxu0
        %v1574 = vmax.f32 %v1572, 0.0
        %v1575 = vadd.f32 %v1574, %v1512
        %1576 = vst.msk [vmem:[#allocation9] sm:$0xff] %vm1509, %v1575
        %v1577 = vld [vmem:[#allocation9] sm:$0xff]
        %v1579 = vrot.slane %v1577, 7
        %v1581 = vsel %vm941, 0.0, %v1579
        %v1582 = vrot.slane %v1577, 1
        %v1584 = vsel %vm1073, %v1582, 0.0
        %1585 = vrot.lane.b32.xlu0 %v1577, 22
        %v1586 = vpop.permute.xlu0 %1585
        %1589 = vrot.lane.b32.xlu0 %v1584, 44
        %v1590 = vpop.permute.xlu0 %1589
        %v1592 = vsel %vm1509, %v1581, %v1586
        %v1593 = vsel %vm1531, %v1592, %v1590
        %v1594 = vld [vmem:[#allocation23] sm:$0xff]
        %v1595 = vld [vmem:[#allocation23 + $0x8] sm:$0xff]
        %v1596 = vld [vmem:[#allocation23 + $0x10] sm:$0xff]
        %v1597 = vld [vmem:[#allocation23 + $0x18] sm:$0xff]
        %v1598 = vld [vmem:[#allocation23 + $0x20] sm:$0xff]
        %v1599 = vld [vmem:[#allocation23 + $0x28] sm:$0xff]
        %v1600 = vld [vmem:[#allocation23 + $0x30] sm:$0xff]
        %v1601 = vld [vmem:[#allocation23 + $0x38] sm:$0xff]
        %v1602 = vld [vmem:[#allocation23 + $0x40] sm:$0x3]
        %v1604 = vsel %vm1546, %v1593, 0
        %v1607 = vsel %vm1550, %v1602, 0
        %1609 = vmatpush.msra.mxu0 0.0
        %1610 = vmatpush.msra.mxu0 0.0
        %1611 = vmatpush.msra.mxu0 0.0
        %1612 = vmatpush.msra.mxu0 0.0
        %1613 = vmatpush.msra.mxu0 0.0
        %1614 = vmatpush.msra.mxu0 0.0
        %1615 = vmatpush.msra.mxu0 0.0
        %1616 = vmatpush.msra.mxu0 %v1607
        %1617 = vmatpush.msra.mxu0 %v1601
        %1618 = vmatpush.msra.mxu0 %v1600
        %1619 = vmatpush.msra.mxu0 %v1599
        %1620 = vmatpush.msra.mxu0 %v1598
        %1621 = vmatpush.msra.mxu0 %v1597
        %1622 = vmatpush.msra.mxu0 %v1596
        %1623 = vmatpush.msra.mxu0 %v1595
        %1624 = vmatpush.msra.mxu0 %v1594
        %1625 = vmatmul.f32.gmra.mxu0 %v1604
        %v1626 = vpop.f32.mrf.mxu0
        %v1627 = vadd.f32 0.0, %v1626
        %1628 = vdwg.mxu0
        %v1629 = vmax.f32 %v1627, 0.0
        %vm1630 = vcmask 105472
        %1631 = vst.msk [vmem:[#allocation10] sm:$0xff] %vm1630, %v1629
        %v1632 = vld [vmem:[%s20] sm:$0x1]
        %v1633 = vld [vmem:[#allocation10] sm:$0xff]
        %v1635 = vrot.slane %v1633, 7
        %v1637 = vsel %vm941, %v1632, %v1635
        %v1638 = vrot.slane %v1633, 1
        %v1641 = vperm.slane %v1632, 0
        %v1643 = vsel %vm1073, %v1638, %v1641
        %1644 = vrot.lane.b32.xlu0 %v1633, 13
        %v1645 = vpop.permute.xlu0 %1644
        %1648 = vrot.lane.b32.xlu0 %v1643, 26
        %v1649 = vpop.permute.xlu0 %1648
        %v1651 = vsel %vm1630, %v1637, %v1645
        %vm1652 = vcmask 211968
        %v1653 = vsel %vm1652, %v1651, %v1649
        %v1654 = vld [vmem:[#allocation24] sm:$0xff]
        %v1655 = vld [vmem:[#allocation24 + $0x8] sm:$0xff]
        %v1656 = vld [vmem:[#allocation24 + $0x10] sm:$0xff]
        %v1657 = vld [vmem:[#allocation24 + $0x18] sm:$0xff]
        %v1658 = vld [vmem:[#allocation24 + $0x20] sm:$0x7f]
        %v1659 = vld [vmem:[%s19] sm:$0x1]
        %v1661 = vperm.slane %v1659, 0
        %vm1663 = vcmask 318464
        %v1665 = vsel %vm1663, %v1653, 0
        %v1668 = vsel %vm1073, %v1658, 0
        %1670 = vmatpush.msra.mxu0 0.0
        %1671 = vmatpush.msra.mxu0 0.0
        %1672 = vmatpush.msra.mxu0 0.0
        %1673 = vmatpush.msra.mxu0 0.0
        %1674 = vmatpush.msra.mxu0 0.0
        %1675 = vmatpush.msra.mxu0 0.0
        %1676 = vmatpush.msra.mxu0 0.0
        %1677 = vmatpush.msra.mxu0 0.0
        %1678 = vmatpush.msra.mxu0 0.0
        %1679 = vmatpush.msra.mxu0 0.0
        %1680 = vmatpush.msra.mxu0 0.0
        %1681 = vmatpush.msra.mxu0 %v1668
        %1682 = vmatpush.msra.mxu0 %v1657
        %1683 = vmatpush.msra.mxu0 %v1656
        %1684 = vmatpush.msra.mxu0 %v1655
        %1685 = vmatpush.msra.mxu0 %v1654
        %1686 = vmatmul.f32.gmra.mxu0 %v1665
        %v1687 = vpop.f32.mrf.mxu0
        %v1688 = vadd.f32 %v1661, %v1687
        %1689 = vdwg.mxu0
        %v1690 = vmax.f32 %v1688, 0.0
        %v1691 = vadd.f32 %v1690, %v1633
        %1692 = vst.msk [vmem:[#allocation11] sm:$0xff] %vm1630, %v1691
        %v1693 = vld [vmem:[#allocation11] sm:$0xff]
        %v1695 = vrot.slane %v1693, 7
        %v1697 = vsel %vm941, 0.0, %v1695
        %v1698 = vrot.slane %v1693, 1
        %v1700 = vsel %vm1073, %v1698, 0.0
        %1701 = vrot.lane.b32.xlu0 %v1693, 13
        %v1702 = vpop.permute.xlu0 %1701
        %1705 = vrot.lane.b32.xlu0 %v1700, 26
        %v1706 = vpop.permute.xlu0 %1705
        %v1708 = vsel %vm1630, %v1697, %v1702
        %v1709 = vsel %vm1652, %v1708, %v1706
        %v1710 = vld [vmem:[#allocation26] sm:$0xff]
        %v1711 = vld [vmem:[#allocation26 + $0x8] sm:$0xff]
        %v1712 = vld [vmem:[#allocation26 + $0x10] sm:$0xff]
        %v1713 = vld [vmem:[#allocation26 + $0x18] sm:$0xff]
        %v1714 = vld [vmem:[#allocation26 + $0x20] sm:$0x7f]
        %v1716 = vsel %vm1663, %v1709, 0
        %v1719 = vsel %vm1073, %v1714, 0
        %1721 = vmatpush.msra.mxu0 0.0
        %1722 = vmatpush.msra.mxu0 0.0
        %1723 = vmatpush.msra.mxu0 0.0
        %1724 = vmatpush.msra.mxu0 0.0
        %1725 = vmatpush.msra.mxu0 0.0
        %1726 = vmatpush.msra.mxu0 0.0
        %1727 = vmatpush.msra.mxu0 0.0
        %1728 = vmatpush.msra.mxu0 0.0
        %1729 = vmatpush.msra.mxu0 0.0
        %1730 = vmatpush.msra.mxu0 0.0
        %1731 = vmatpush.msra.mxu0 0.0
        %1732 = vmatpush.msra.mxu0 %v1719
        %1733 = vmatpush.msra.mxu0 %v1713
        %1734 = vmatpush.msra.mxu0 %v1712
        %1735 = vmatpush.msra.mxu0 %v1711
        %1736 = vmatpush.msra.mxu0 %v1710
        %1737 = vmatmul.f32.gmra.mxu0 %v1716
        %v1738 = vpop.f32.mrf.mxu0
        %v1739 = vadd.f32 0.0, %v1738
        %1740 = vdwg.mxu0
        %v1741 = vmax.f32 %v1739, 0.0
        %vm1742 = vcmask 31744
        %1743 = vst.msk [vmem:[#allocation12] sm:$0xff] %vm1742, %v1741
        %v1744 = vld [vmem:[%s24] sm:$0x1]
        %v1745 = vld [vmem:[#allocation12] sm:$0xff]
        %v1747 = vrot.slane %v1745, 7
        %v1749 = vsel %vm941, %v1744, %v1747
        %v1750 = vrot.slane %v1745, 1
        %v1753 = vperm.slane %v1744, 0
        %v1755 = vsel %vm1073, %v1750, %v1753
        %1756 = vrot.lane.b32.xlu0 %v1745, 4
        %v1757 = vpop.permute.xlu0 %1756
        %1760 = vrot.lane.b32.xlu0 %v1755, 8
        %v1761 = vpop.permute.xlu0 %1760
        %v1763 = vsel %vm1742, %v1749, %v1757
        %v1764 = vsel %vm989, %v1763, %v1761
        %v1765 = vld [vmem:[#allocation27] sm:$0xff]
        %v1766 = vld [vmem:[#allocation27 + $0x8] sm:$0xf]
        %v1767 = vld [vmem:[%s23] sm:$0x1]
        %v1769 = vperm.slane %v1767, 0
        %vm1771 = vcmask 97280
        %v1773 = vsel %vm1771, %v1764, 0
        %vm1775 = vcmask 1043456
        %v1777 = vsel %vm1775, %v1766, 0
        %1779 = vmatpush.msra.mxu0 0.0
        %1780 = vmatpush.msra.mxu0 0.0
        %1781 = vmatpush.msra.mxu0 0.0
        %1782 = vmatpush.msra.mxu0 0.0
        %1783 = vmatpush.msra.mxu0 0.0
        %1784 = vmatpush.msra.mxu0 0.0
        %1785 = vmatpush.msra.mxu0 0.0
        %1786 = vmatpush.msra.mxu0 0.0
        %1787 = vmatpush.msra.mxu0 0.0
        %1788 = vmatpush.msra.mxu0 0.0
        %1789 = vmatpush.msra.mxu0 0.0
        %1790 = vmatpush.msra.mxu0 0.0
        %1791 = vmatpush.msra.mxu0 0.0
        %1792 = vmatpush.msra.mxu0 0.0
        %1793 = vmatpush.msra.mxu0 %v1777
        %1794 = vmatpush.msra.mxu0 %v1765
        %1795 = vmatmul.f32.gmra.mxu0 %v1773
        %v1796 = vpop.f32.mrf.mxu0
        %v1797 = vadd.f32 %v1769, %v1796
        %1798 = vdwg.mxu0
        %v1799 = vmax.f32 %v1797, 0.0
        %v1800 = vadd.f32 %v1799, %v1745
        %1801 = vst.msk [vmem:[%s928] sm:$0xff] %vm1742, %v1800
        %p1802 = scmp.lt.s32.totalorder %s42, 1
        %s1803 = scalar_select %p1802, %s42, 1
        %s1804 = smul.addr %s1803, 8
        %s1805 = scalar_lea.vmem %s25, %s1804
        // Predicated region
        $region161: #{_lambda_.2} parent=119 // pred_check
          %p1806 = pneg %p590
        $region162: #{_lambda_.2} parent=119 // pred_check_branch
          %1808 = sbr.rel (%p1806) target = $region164
        $region163: #{_lambda_.2} parent=119 // pred_region
          _
        $region164: #{_lambda_.2} parent=119 // pred_fallthru
          _
      $region120: #{_lambda_.2} parent=5 // pred_fallthru
        _
      %p1809 = scmp.le.s32.totalorder 2, %s37
      // Predicated region
      $region165: #{_lambda_.2} parent=5 // pred_check
        %p1810 = pneg %p1809
      $region166: #{_lambda_.2} parent=5 // pred_check_branch
        %1812 = sbr.rel (%p1810) target = $region168
      $region167: #{_lambda_.2} parent=5 // pred_region
        %s1813 = ssub.s32 %s37, 2
        // Predicated region
        $region169: #{_lambda_.2} parent=167 // pred_check
          %p1814 = pneg %p596
        $region170: #{_lambda_.2} parent=167 // pred_check_branch
          %1816 = sbr.rel (%p1814) target = $region172
        $region171: #{_lambda_.2} parent=167 // pred_region
          %p1817 = scmp.lt.s32.totalorder %s43, 1
          %s1818 = scalar_select %p1817, %s43, 1
          %s1819 = smul.addr %s1818, 8
          %s1820 = scalar_lea.vmem %s25, %s1819
        $region172: #{_lambda_.2} parent=167 // pred_fallthru
          _
      $region168: #{_lambda_.2} parent=5 // pred_fallthru
        _
    $region6: #{_lambda_.2} parent=1 // loop_footer
      %s41 = sadd.s32 1, %s37
    $region7: #{_lambda_.2} parent=1 // loop_footer_branch
      %36 = sbr.rel target = $region3
    $region8: #{_lambda_.2} parent=1 // loop_exit
      _
    %1821 = vsyncpa [#allocation14], 1
    %s1822 = scalar_lea.sflag [#allocation14], 1
    %1823 = vsyncpa %s1822, 1
    %1824 = vsyncpa [#allocation16], 1
    %1825 = vsyncpa [#allocation19], 1
    %1826 = vsyncpa [#allocation22], 1
    %1827 = vsyncpa [#allocation25], 1
    %1828 = vsyncpa [#allocation28], 1

</llo_original>
